<compile_context>
chip_gen: v7x
topology: tpu7x:2x2x1
jax: 0.10.0
libtpu: 0.0.40
codegen_flags: <defaults>
</compile_context>

<pallas_src>
import jax
import jax.numpy as jnp
import numpy as np
from jax import lax
from jax.experimental import pallas as pl
from jax.experimental.pallas import tpu as pltpu


def rnn_fused_kernel(x_ref, wih_ref, b_ref, whh_ref, o_ref):
    """Fused input projection + full ReLU-RNN recurrence in one invocation.

    x_ref  : (N_pad, T, 1)      raw batch-first input (zero-padded batch rows)
    wih_ref: (1, H_pad)         W_ih^T (input_size == 1), zero-padded lanes
    b_ref  : (1, H_pad)         b_ih + b_hh, zero-padded lanes
    whh_ref: (H_pad, H_pad)     W_hh^T, zero-padded rows/cols
    o_ref  : (N_pad, T, H_pad)  all hidden states, batch-first, VMEM resident
    """
    T = o_ref.shape[1]
    wih = wih_ref[...]          # (1, H_pad) -- 1 vreg, cheap to keep live
    b = b_ref[...]              # (1, H_pad)

    def xb(t):
        # Input projection for timestep t. input_size == 1, so the contraction
        # is an exact f32 broadcast-multiply on the VPU: (N_pad,1)*(1,H_pad)+b.
        # No dependence on the h-chain -> scheduler overlaps it with MXU waits.
        return x_ref[:, t, :] * wih + b

    # h_0 = 0  =>  h_1 = relu(xb_1)
    h = jnp.maximum(xb(0), 0.0)
    o_ref[:, 0, :] = h

    # Fully unrolled static loop (T is small & static); only the HxH matmul is
    # serial. whh_ref[...] is fed directly to the dot (no vreg hoist) so a
    # larger H_pad would not pin 16+ vregs live across the unrolled chain.
    for t in range(1, T):
        pre = xb(t) + jnp.dot(h, whh_ref[...], preferred_element_type=jnp.float32)
        h = jnp.maximum(pre, 0.0)          # nonlinearity='relu'
        o_ref[:, t, :] = h                 # batch-first store (VMEM resident)


def _round_up(v, m):
    return ((v + m - 1) // m) * m


@jax.jit
def vanilla_rnn_forward(x, w_ih, w_hh, b_ih, b_hh):
    """x: [N, T, 1] float32. Returns all hidden states [N, T, H] (== rnn(x)[0])."""
    N, T, I = x.shape
    H = w_ih.shape[0]

    N_pad = max(8, _round_up(N, 8))        # sublane alignment for the matmul LHS
    H_pad = max(128, _round_up(H, 128))    # lane alignment

    x = x.astype(jnp.float32)
    # The only pre-kernel op: pad batch rows with zeros (harmless: padded rows
    # evolve independently and are sliced off; padded lanes of W/b are zero so
    # live lanes are never contaminated).
    x_pad = jnp.pad(x, ((0, N_pad - N), (0, 0), (0, 0)))          # (N_pad, T, 1)

    wih_pad = jnp.pad(jnp.asarray(w_ih, jnp.float32).T,           # (1, H) -> (1, H_pad)
                      ((0, 0), (0, H_pad - H)))
    b = jnp.asarray(b_ih, jnp.float32) + jnp.asarray(b_hh, jnp.float32)
    b_pad = jnp.pad(b[None, :], ((0, 0), (0, H_pad - H)))         # (1, H_pad)
    whh_pad = jnp.pad(jnp.asarray(w_hh, jnp.float32).T,           # (H_pad, H_pad)
                      ((0, H_pad - H), (0, H_pad - H)))

    vmem = pltpu.MemorySpace.VMEM
    out_pad = pl.pallas_call(
        rnn_fused_kernel,
        out_shape=jax.ShapeDtypeStruct((N_pad, T, H_pad), jnp.float32),
        in_specs=[
            pl.BlockSpec(memory_space=vmem),   # x (raw, batch-first)
            pl.BlockSpec(memory_space=vmem),   # W_ih^T
            pl.BlockSpec(memory_space=vmem),   # b_ih + b_hh
            pl.BlockSpec(memory_space=vmem),   # W_hh^T
        ],
        out_specs=pl.BlockSpec(memory_space=vmem),
    )(x_pad, wih_pad, b_pad, whh_pad)

    # The only post-kernel op: drop padding (output is already batch-first).
    return out_pad[:N, :, :H]


def vanilla_rnn_reference(x, w_ih, w_hh, b_ih, b_hh):
    """Pure-JAX reference matching torch.nn.RNN(nonlinearity='relu', batch_first=True).

    With input_size == 1 the input contraction is exactly a scalar multiply, so
    it is written elementwise (exact f32), matching the kernel's projection.
    """
    N = x.shape[0]
    H = w_ih.shape[0]
    h0 = jnp.zeros((N, H), jnp.float32)
    wih_row = jnp.asarray(w_ih, jnp.float32)[:, 0][None, :]       # (1, H)

    def step(h, x_t):
        xb_t = x_t * wih_row + b_ih                               # (N,1)*(1,H)
        h_new = jnp.maximum(xb_t + h @ w_hh.T + b_hh, 0.0)
        return h_new, h_new

    _, hs = lax.scan(step, h0, jnp.swapaxes(x, 0, 1))             # (T, N, H)
    return jnp.swapaxes(hs, 0, 1)                                 # (N, T, H)


if __name__ == "__main__":
    # Shapes implied by the module forward: x = [N, 10, 1]; hidden_size small.
    N, T, I, H = 2, 10, 1, 32

    key = jax.random.PRNGKey(0)
    kx, kwih, kwhh, kbih, kbhh = jax.random.split(key, 5)

    # Same parameter shapes as nn.RNN(input_size=1, hidden_size=H):
    # weight_ih_l0: (H, I), weight_hh_l0: (H, H), bias_ih_l0: (H,), bias_hh_l0: (H,)
    bound = 1.0 / np.sqrt(H)
    x = jax.random.normal(kx, (N, T, I), jnp.float32)
    w_ih = jax.random.uniform(kwih, (H, I), jnp.float32, -bound, bound)
    w_hh = jax.random.uniform(kwhh, (H, H), jnp.float32, -bound, bound)
    b_ih = jax.random.uniform(kbih, (H,), jnp.float32, -bound, bound)
    b_hh = jax.random.uniform(kbhh, (H,), jnp.float32, -bound, bound)

    out = jax.block_until_ready(vanilla_rnn_forward(x, w_ih, w_hh, b_ih, b_hh))
    ref = jax.block_until_ready(vanilla_rnn_reference(x, w_ih, w_hh, b_ih, b_hh))

    assert out.shape == (N, T, H), out.shape
    np.testing.assert_allclose(np.asarray(out), np.asarray(ref), rtol=1e-5, atol=1e-5)

    print("KERNEL_OK")
</pallas_src>

<mosaic_0001>
module attributes {stable_mosaic.version = 11 : i64} {
  func.func @rnn_fused_kernel(%arg0: memref<8x10x1xf32, #tpu.memory_space<vmem>>, %arg1: memref<1x128xf32, #tpu.memory_space<vmem>>, %arg2: memref<1x128xf32, #tpu.memory_space<vmem>>, %arg3: memref<128x128xf32, #tpu.memory_space<vmem>>, %arg4: memref<8x10x128xf32, #tpu.memory_space<vmem>>) attributes {dimension_semantics = [], scalar_prefetch = 0 : i64, scratch_operands = 0 : i64, tpu.core_type = #tpu.core_type<tc>} {
    %c0 = arith.constant 0 : index
    %c0_0 = arith.constant 0 : index
    %0 = vector.load %arg1[%c0, %c0_0] : memref<1x128xf32, #tpu.memory_space<vmem>>, vector<1x128xf32>
    %c0_1 = arith.constant 0 : index
    %c0_2 = arith.constant 0 : index
    %1 = vector.load %arg2[%c0_1, %c0_2] : memref<1x128xf32, #tpu.memory_space<vmem>>, vector<1x128xf32>
    %c0_3 = arith.constant 0 : index
    %c0_4 = arith.constant 0 : index
    %c0_5 = arith.constant 0 : index
    %2 = vector.load %arg0[%c0_3, %c0_4, %c0_5] : memref<8x10x1xf32, #tpu.memory_space<vmem>>, vector<8x1x1xf32>
    %3 = vector.shape_cast %2 : vector<8x1x1xf32> to vector<8x1xf32>
    %4 = vector.broadcast %3 : vector<8x1xf32> to vector<8x128xf32>
    %5 = vector.broadcast %0 : vector<1x128xf32> to vector<8x128xf32>
    %6 = arith.mulf %4, %5 : vector<8x128xf32>
    %7 = vector.broadcast %1 : vector<1x128xf32> to vector<8x128xf32>
    %8 = arith.addf %6, %7 : vector<8x128xf32>
    %cst = arith.constant 0.000000e+00 : f32
    %9 = vector.broadcast %cst : f32 to vector<8x128xf32>
    %10 = arith.maximumf %8, %9 : vector<8x128xf32>
    %c0_6 = arith.constant 0 : index
    %c0_7 = arith.constant 0 : index
    %c0_8 = arith.constant 0 : index
    %11 = vector.load %arg4[%c0_6, %c0_7, %c0_8] : memref<8x10x128xf32, #tpu.memory_space<vmem>>, vector<8x1x128xf32>
    %12 = vector.shape_cast %11 : vector<8x1x128xf32> to vector<8x128xf32>
    %13 = vector.shape_cast %10 : vector<8x128xf32> to vector<8x1x128xf32>
    tpu.vector_store %arg4[%c0_6, %c0_7, %c0_8], %13 {strides = array<i32>} : memref<8x10x128xf32, #tpu.memory_space<vmem>>, vector<8x1x128xf32>,
    %c0_9 = arith.constant 0 : index
    %c1 = arith.constant 1 : index
    %c0_10 = arith.constant 0 : index
    %14 = vector.load %arg0[%c0_9, %c1, %c0_10] : memref<8x10x1xf32, #tpu.memory_space<vmem>>, vector<8x1x1xf32>
    %15 = vector.shape_cast %14 : vector<8x1x1xf32> to vector<8x1xf32>
    %16 = vector.broadcast %15 : vector<8x1xf32> to vector<8x128xf32>
    %17 = vector.broadcast %0 : vector<1x128xf32> to vector<8x128xf32>
    %18 = arith.mulf %16, %17 : vector<8x128xf32>
    %19 = vector.broadcast %1 : vector<1x128xf32> to vector<8x128xf32>
    %20 = arith.addf %18, %19 : vector<8x128xf32>
    %c0_11 = arith.constant 0 : index
    %c0_12 = arith.constant 0 : index
    %21 = vector.load %arg3[%c0_11, %c0_12] : memref<128x128xf32, #tpu.memory_space<vmem>>, vector<128x128xf32>
    %cst_13 = arith.constant dense<0.000000e+00> : vector<8x128xf32>
    %22 = tpu.matmul %10, %21, %cst_13 {dimension_numbers = #tpu.dot_dimension_numbers<[1], [0], [0], [1], [0, 0, 1, 1], [], []>} : vector<8x128xf32>, vector<128x128xf32>, vector<8x128xf32> -> vector<8x128xf32>
    %23 = arith.addf %20, %22 : vector<8x128xf32>
    %cst_14 = arith.constant 0.000000e+00 : f32
    %24 = vector.broadcast %cst_14 : f32 to vector<8x128xf32>
    %25 = arith.maximumf %23, %24 : vector<8x128xf32>
    %c0_15 = arith.constant 0 : index
    %c1_16 = arith.constant 1 : index
    %c0_17 = arith.constant 0 : index
    %26 = vector.load %arg4[%c0_15, %c1_16, %c0_17] : memref<8x10x128xf32, #tpu.memory_space<vmem>>, vector<8x1x128xf32>
    %27 = vector.shape_cast %26 : vector<8x1x128xf32> to vector<8x128xf32>
    %28 = vector.shape_cast %25 : vector<8x128xf32> to vector<8x1x128xf32>
    tpu.vector_store %arg4[%c0_15, %c1_16, %c0_17], %28 {strides = array<i32>} : memref<8x10x128xf32, #tpu.memory_space<vmem>>, vector<8x1x128xf32>,
    %c0_18 = arith.constant 0 : index
    %c2 = arith.constant 2 : index
    %c0_19 = arith.constant 0 : index
    %29 = vector.load %arg0[%c0_18, %c2, %c0_19] : memref<8x10x1xf32, #tpu.memory_space<vmem>>, vector<8x1x1xf32>
    %30 = vector.shape_cast %29 : vector<8x1x1xf32> to vector<8x1xf32>
    %31 = vector.broadcast %30 : vector<8x1xf32> to vector<8x128xf32>
    %32 = vector.broadcast %0 : vector<1x128xf32> to vector<8x128xf32>
    %33 = arith.mulf %31, %32 : vector<8x128xf32>
    %34 = vector.broadcast %1 : vector<1x128xf32> to vector<8x128xf32>
    %35 = arith.addf %33, %34 : vector<8x128xf32>
    %c0_20 = arith.constant 0 : index
    %c0_21 = arith.constant 0 : index
    %36 = vector.load %arg3[%c0_20, %c0_21] : memref<128x128xf32, #tpu.memory_space<vmem>>, vector<128x128xf32>
    %cst_22 = arith.constant dense<0.000000e+00> : vector<8x128xf32>
    %37 = tpu.matmul %25, %36, %cst_22 {dimension_numbers = #tpu.dot_dimension_numbers<[1], [0], [0], [1], [0, 0, 1, 1], [], []>} : vector<8x128xf32>, vector<128x128xf32>, vector<8x128xf32> -> vector<8x128xf32>
    %38 = arith.addf %35, %37 : vector<8x128xf32>
    %cst_23 = arith.constant 0.000000e+00 : f32
    %39 = vector.broadcast %cst_23 : f32 to vector<8x128xf32>
    %40 = arith.maximumf %38, %39 : vector<8x128xf32>
    %c0_24 = arith.constant 0 : index
    %c2_25 = arith.constant 2 : index
    %c0_26 = arith.constant 0 : index
    %41 = vector.load %arg4[%c0_24, %c2_25, %c0_26] : memref<8x10x128xf32, #tpu.memory_space<vmem>>, vector<8x1x128xf32>
    %42 = vector.shape_cast %41 : vector<8x1x128xf32> to vector<8x128xf32>
    %43 = vector.shape_cast %40 : vector<8x128xf32> to vector<8x1x128xf32>
    tpu.vector_store %arg4[%c0_24, %c2_25, %c0_26], %43 {strides = array<i32>} : memref<8x10x128xf32, #tpu.memory_space<vmem>>, vector<8x1x128xf32>,
    %c0_27 = arith.constant 0 : index
    %c3 = arith.constant 3 : index
    %c0_28 = arith.constant 0 : index
    %44 = vector.load %arg0[%c0_27, %c3, %c0_28] : memref<8x10x1xf32, #tpu.memory_space<vmem>>, vector<8x1x1xf32>
    %45 = vector.shape_cast %44 : vector<8x1x1xf32> to vector<8x1xf32>
    %46 = vector.broadcast %45 : vector<8x1xf32> to vector<8x128xf32>
    %47 = vector.broadcast %0 : vector<1x128xf32> to vector<8x128xf32>
    %48 = arith.mulf %46, %47 : vector<8x128xf32>
    %49 = vector.broadcast %1 : vector<1x128xf32> to vector<8x128xf32>
    %50 = arith.addf %48, %49 : vector<8x128xf32>
    %c0_29 = arith.constant 0 : index
    %c0_30 = arith.constant 0 : index
    %51 = vector.load %arg3[%c0_29, %c0_30] : memref<128x128xf32, #tpu.memory_space<vmem>>, vector<128x128xf32>
    %cst_31 = arith.constant dense<0.000000e+00> : vector<8x128xf32>
    %52 = tpu.matmul %40, %51, %cst_31 {dimension_numbers = #tpu.dot_dimension_numbers<[1], [0], [0], [1], [0, 0, 1, 1], [], []>} : vector<8x128xf32>, vector<128x128xf32>, vector<8x128xf32> -> vector<8x128xf32>
    %53 = arith.addf %50, %52 : vector<8x128xf32>
    %cst_32 = arith.constant 0.000000e+00 : f32
    %54 = vector.broadcast %cst_32 : f32 to vector<8x128xf32>
    %55 = arith.maximumf %53, %54 : vector<8x128xf32>
    %c0_33 = arith.constant 0 : index
    %c3_34 = arith.constant 3 : index
    %c0_35 = arith.constant 0 : index
    %56 = vector.load %arg4[%c0_33, %c3_34, %c0_35] : memref<8x10x128xf32, #tpu.memory_space<vmem>>, vector<8x1x128xf32>
    %57 = vector.shape_cast %56 : vector<8x1x128xf32> to vector<8x128xf32>
    %58 = vector.shape_cast %55 : vector<8x128xf32> to vector<8x1x128xf32>
    tpu.vector_store %arg4[%c0_33, %c3_34, %c0_35], %58 {strides = array<i32>} : memref<8x10x128xf32, #tpu.memory_space<vmem>>, vector<8x1x128xf32>,
    %c0_36 = arith.constant 0 : index
    %c4 = arith.constant 4 : index
    %c0_37 = arith.constant 0 : index
    %59 = vector.load %arg0[%c0_36, %c4, %c0_37] : memref<8x10x1xf32, #tpu.memory_space<vmem>>, vector<8x1x1xf32>
    %60 = vector.shape_cast %59 : vector<8x1x1xf32> to vector<8x1xf32>
    %61 = vector.broadcast %60 : vector<8x1xf32> to vector<8x128xf32>
    %62 = vector.broadcast %0 : vector<1x128xf32> to vector<8x128xf32>
    %63 = arith.mulf %61, %62 : vector<8x128xf32>
    %64 = vector.broadcast %1 : vector<1x128xf32> to vector<8x128xf32>
    %65 = arith.addf %63, %64 : vector<8x128xf32>
    %c0_38 = arith.constant 0 : index
    %c0_39 = arith.constant 0 : index
    %66 = vector.load %arg3[%c0_38, %c0_39] : memref<128x128xf32, #tpu.memory_space<vmem>>, vector<128x128xf32>
    %cst_40 = arith.constant dense<0.000000e+00> : vector<8x128xf32>
    %67 = tpu.matmul %55, %66, %cst_40 {dimension_numbers = #tpu.dot_dimension_numbers<[1], [0], [0], [1], [0, 0, 1, 1], [], []>} : vector<8x128xf32>, vector<128x128xf32>, vector<8x128xf32> -> vector<8x128xf32>
    %68 = arith.addf %65, %67 : vector<8x128xf32>
    %cst_41 = arith.constant 0.000000e+00 : f32
    %69 = vector.broadcast %cst_41 : f32 to vector<8x128xf32>
    %70 = arith.maximumf %68, %69 : vector<8x128xf32>
    %c0_42 = arith.constant 0 : index
    %c4_43 = arith.constant 4 : index
    %c0_44 = arith.constant 0 : index
    %71 = vector.load %arg4[%c0_42, %c4_43, %c0_44] : memref<8x10x128xf32, #tpu.memory_space<vmem>>, vector<8x1x128xf32>
    %72 = vector.shape_cast %71 : vector<8x1x128xf32> to vector<8x128xf32>
    %73 = vector.shape_cast %70 : vector<8x128xf32> to vector<8x1x128xf32>
    tpu.vector_store %arg4[%c0_42, %c4_43, %c0_44], %73 {strides = array<i32>} : memref<8x10x128xf32, #tpu.memory_space<vmem>>, vector<8x1x128xf32>,
    %c0_45 = arith.constant 0 : index
    %c5 = arith.constant 5 : index
    %c0_46 = arith.constant 0 : index
    %74 = vector.load %arg0[%c0_45, %c5, %c0_46] : memref<8x10x1xf32, #tpu.memory_space<vmem>>, vector<8x1x1xf32>
    %75 = vector.shape_cast %74 : vector<8x1x1xf32> to vector<8x1xf32>
    %76 = vector.broadcast %75 : vector<8x1xf32> to vector<8x128xf32>
    %77 = vector.broadcast %0 : vector<1x128xf32> to vector<8x128xf32>
    %78 = arith.mulf %76, %77 : vector<8x128xf32>
    %79 = vector.broadcast %1 : vector<1x128xf32> to vector<8x128xf32>
    %80 = arith.addf %78, %79 : vector<8x128xf32>
    %c0_47 = arith.constant 0 : index
    %c0_48 = arith.constant 0 : index
    %81 = vector.load %arg3[%c0_47, %c0_48] : memref<128x128xf32, #tpu.memory_space<vmem>>, vector<128x128xf32>
    %cst_49 = arith.constant dense<0.000000e+00> : vector<8x128xf32>
    %82 = tpu.matmul %70, %81, %cst_49 {dimension_numbers = #tpu.dot_dimension_numbers<[1], [0], [0], [1], [0, 0, 1, 1], [], []>} : vector<8x128xf32>, vector<128x128xf32>, vector<8x128xf32> -> vector<8x128xf32>
    %83 = arith.addf %80, %82 : vector<8x128xf32>
    %cst_50 = arith.constant 0.000000e+00 : f32
    %84 = vector.broadcast %cst_50 : f32 to vector<8x128xf32>
    %85 = arith.maximumf %83, %84 : vector<8x128xf32>
    %c0_51 = arith.constant 0 : index
    %c5_52 = arith.constant 5 : index
    %c0_53 = arith.constant 0 : index
    %86 = vector.load %arg4[%c0_51, %c5_52, %c0_53] : memref<8x10x128xf32, #tpu.memory_space<vmem>>, vector<8x1x128xf32>
    %87 = vector.shape_cast %86 : vector<8x1x128xf32> to vector<8x128xf32>
    %88 = vector.shape_cast %85 : vector<8x128xf32> to vector<8x1x128xf32>
    tpu.vector_store %arg4[%c0_51, %c5_52, %c0_53], %88 {strides = array<i32>} : memref<8x10x128xf32, #tpu.memory_space<vmem>>, vector<8x1x128xf32>,
    %c0_54 = arith.constant 0 : index
    %c6 = arith.constant 6 : index
    %c0_55 = arith.constant 0 : index
    %89 = vector.load %arg0[%c0_54, %c6, %c0_55] : memref<8x10x1xf32, #tpu.memory_space<vmem>>, vector<8x1x1xf32>
    %90 = vector.shape_cast %89 : vector<8x1x1xf32> to vector<8x1xf32>
    %91 = vector.broadcast %90 : vector<8x1xf32> to vector<8x128xf32>
    %92 = vector.broadcast %0 : vector<1x128xf32> to vector<8x128xf32>
    %93 = arith.mulf %91, %92 : vector<8x128xf32>
    %94 = vector.broadcast %1 : vector<1x128xf32> to vector<8x128xf32>
    %95 = arith.addf %93, %94 : vector<8x128xf32>
    %c0_56 = arith.constant 0 : index
    %c0_57 = arith.constant 0 : index
    %96 = vector.load %arg3[%c0_56, %c0_57] : memref<128x128xf32, #tpu.memory_space<vmem>>, vector<128x128xf32>
    %cst_58 = arith.constant dense<0.000000e+00> : vector<8x128xf32>
    %97 = tpu.matmul %85, %96, %cst_58 {dimension_numbers = #tpu.dot_dimension_numbers<[1], [0], [0], [1], [0, 0, 1, 1], [], []>} : vector<8x128xf32>, vector<128x128xf32>, vector<8x128xf32> -> vector<8x128xf32>
    %98 = arith.addf %95, %97 : vector<8x128xf32>
    %cst_59 = arith.constant 0.000000e+00 : f32
    %99 = vector.broadcast %cst_59 : f32 to vector<8x128xf32>
    %100 = arith.maximumf %98, %99 : vector<8x128xf32>
    %c0_60 = arith.constant 0 : index
    %c6_61 = arith.constant 6 : index
    %c0_62 = arith.constant 0 : index
    %101 = vector.load %arg4[%c0_60, %c6_61, %c0_62] : memref<8x10x128xf32, #tpu.memory_space<vmem>>, vector<8x1x128xf32>
    %102 = vector.shape_cast %101 : vector<8x1x128xf32> to vector<8x128xf32>
    %103 = vector.shape_cast %100 : vector<8x128xf32> to vector<8x1x128xf32>
    tpu.vector_store %arg4[%c0_60, %c6_61, %c0_62], %103 {strides = array<i32>} : memref<8x10x128xf32, #tpu.memory_space<vmem>>, vector<8x1x128xf32>,
    %c0_63 = arith.constant 0 : index
    %c7 = arith.constant 7 : index
    %c0_64 = arith.constant 0 : index
    %104 = vector.load %arg0[%c0_63, %c7, %c0_64] : memref<8x10x1xf32, #tpu.memory_space<vmem>>, vector<8x1x1xf32>
    %105 = vector.shape_cast %104 : vector<8x1x1xf32> to vector<8x1xf32>
    %106 = vector.broadcast %105 : vector<8x1xf32> to vector<8x128xf32>
    %107 = vector.broadcast %0 : vector<1x128xf32> to vector<8x128xf32>
    %108 = arith.mulf %106, %107 : vector<8x128xf32>
    %109 = vector.broadcast %1 : vector<1x128xf32> to vector<8x128xf32>
    %110 = arith.addf %108, %109 : vector<8x128xf32>
    %c0_65 = arith.constant 0 : index
    %c0_66 = arith.constant 0 : index
    %111 = vector.load %arg3[%c0_65, %c0_66] : memref<128x128xf32, #tpu.memory_space<vmem>>, vector<128x128xf32>
    %cst_67 = arith.constant dense<0.000000e+00> : vector<8x128xf32>
    %112 = tpu.matmul %100, %111, %cst_67 {dimension_numbers = #tpu.dot_dimension_numbers<[1], [0], [0], [1], [0, 0, 1, 1], [], []>} : vector<8x128xf32>, vector<128x128xf32>, vector<8x128xf32> -> vector<8x128xf32>
    %113 = arith.addf %110, %112 : vector<8x128xf32>
    %cst_68 = arith.constant 0.000000e+00 : f32
    %114 = vector.broadcast %cst_68 : f32 to vector<8x128xf32>
    %115 = arith.maximumf %113, %114 : vector<8x128xf32>
    %c0_69 = arith.constant 0 : index
    %c7_70 = arith.constant 7 : index
    %c0_71 = arith.constant 0 : index
    %116 = vector.load %arg4[%c0_69, %c7_70, %c0_71] : memref<8x10x128xf32, #tpu.memory_space<vmem>>, vector<8x1x128xf32>
    %117 = vector.shape_cast %116 : vector<8x1x128xf32> to vector<8x128xf32>
    %118 = vector.shape_cast %115 : vector<8x128xf32> to vector<8x1x128xf32>
    tpu.vector_store %arg4[%c0_69, %c7_70, %c0_71], %118 {strides = array<i32>} : memref<8x10x128xf32, #tpu.memory_space<vmem>>, vector<8x1x128xf32>,
    %c0_72 = arith.constant 0 : index
    %c8 = arith.constant 8 : index
    %c0_73 = arith.constant 0 : index
    %119 = vector.load %arg0[%c0_72, %c8, %c0_73] : memref<8x10x1xf32, #tpu.memory_space<vmem>>, vector<8x1x1xf32>
    %120 = vector.shape_cast %119 : vector<8x1x1xf32> to vector<8x1xf32>
    %121 = vector.broadcast %120 : vector<8x1xf32> to vector<8x128xf32>
    %122 = vector.broadcast %0 : vector<1x128xf32> to vector<8x128xf32>
    %123 = arith.mulf %121, %122 : vector<8x128xf32>
    %124 = vector.broadcast %1 : vector<1x128xf32> to vector<8x128xf32>
    %125 = arith.addf %123, %124 : vector<8x128xf32>
    %c0_74 = arith.constant 0 : index
    %c0_75 = arith.constant 0 : index
    %126 = vector.load %arg3[%c0_74, %c0_75] : memref<128x128xf32, #tpu.memory_space<vmem>>, vector<128x128xf32>
    %cst_76 = arith.constant dense<0.000000e+00> : vector<8x128xf32>
    %127 = tpu.matmul %115, %126, %cst_76 {dimension_numbers = #tpu.dot_dimension_numbers<[1], [0], [0], [1], [0, 0, 1, 1], [], []>} : vector<8x128xf32>, vector<128x128xf32>, vector<8x128xf32> -> vector<8x128xf32>
    %128 = arith.addf %125, %127 : vector<8x128xf32>
    %cst_77 = arith.constant 0.000000e+00 : f32
    %129 = vector.broadcast %cst_77 : f32 to vector<8x128xf32>
    %130 = arith.maximumf %128, %129 : vector<8x128xf32>
    %c0_78 = arith.constant 0 : index
    %c8_79 = arith.constant 8 : index
    %c0_80 = arith.constant 0 : index
    %131 = vector.load %arg4[%c0_78, %c8_79, %c0_80] : memref<8x10x128xf32, #tpu.memory_space<vmem>>, vector<8x1x128xf32>
    %132 = vector.shape_cast %131 : vector<8x1x128xf32> to vector<8x128xf32>
    %133 = vector.shape_cast %130 : vector<8x128xf32> to vector<8x1x128xf32>
    tpu.vector_store %arg4[%c0_78, %c8_79, %c0_80], %133 {strides = array<i32>} : memref<8x10x128xf32, #tpu.memory_space<vmem>>, vector<8x1x128xf32>,
    %c0_81 = arith.constant 0 : index
    %c9 = arith.constant 9 : index
    %c0_82 = arith.constant 0 : index
    %134 = vector.load %arg0[%c0_81, %c9, %c0_82] : memref<8x10x1xf32, #tpu.memory_space<vmem>>, vector<8x1x1xf32>
    %135 = vector.shape_cast %134 : vector<8x1x1xf32> to vector<8x1xf32>
    %136 = vector.broadcast %135 : vector<8x1xf32> to vector<8x128xf32>
    %137 = vector.broadcast %0 : vector<1x128xf32> to vector<8x128xf32>
    %138 = arith.mulf %136, %137 : vector<8x128xf32>
    %139 = vector.broadcast %1 : vector<1x128xf32> to vector<8x128xf32>
    %140 = arith.addf %138, %139 : vector<8x128xf32>
    %c0_83 = arith.constant 0 : index
    %c0_84 = arith.constant 0 : index
    %141 = vector.load %arg3[%c0_83, %c0_84] : memref<128x128xf32, #tpu.memory_space<vmem>>, vector<128x128xf32>
    %cst_85 = arith.constant dense<0.000000e+00> : vector<8x128xf32>
    %142 = tpu.matmul %130, %141, %cst_85 {dimension_numbers = #tpu.dot_dimension_numbers<[1], [0], [0], [1], [0, 0, 1, 1], [], []>} : vector<8x128xf32>, vector<128x128xf32>, vector<8x128xf32> -> vector<8x128xf32>
    %143 = arith.addf %140, %142 : vector<8x128xf32>
    %cst_86 = arith.constant 0.000000e+00 : f32
    %144 = vector.broadcast %cst_86 : f32 to vector<8x128xf32>
    %145 = arith.maximumf %143, %144 : vector<8x128xf32>
    %c0_87 = arith.constant 0 : index
    %c9_88 = arith.constant 9 : index
    %c0_89 = arith.constant 0 : index
    %146 = vector.load %arg4[%c0_87, %c9_88, %c0_89] : memref<8x10x128xf32, #tpu.memory_space<vmem>>, vector<8x1x128xf32>
    %147 = vector.shape_cast %146 : vector<8x1x128xf32> to vector<8x128xf32>
    %148 = vector.shape_cast %145 : vector<8x128xf32> to vector<8x1x128xf32>
    tpu.vector_store %arg4[%c0_87, %c9_88, %c0_89], %148 {strides = array<i32>} : memref<8x10x128xf32, #tpu.memory_space<vmem>>, vector<8x1x128xf32>,
    return
  }
}

</mosaic_0001>

<llo_original>
// kernel: vanilla_rnn_forward.1
$region0: #{vanilla_rnn_forward.1}
  #allocation0 [shape = 'u32[]', space=smem, size = 0x4, offset = 0x4, fixed_abs, tag = 'smem constant byte address 0x4 - core index']
  #allocation1 [shape = 'u32[144,128]{1,0:T(1,128)}', space=vmem, size = 0x12000, scoped, tag = 'internal scratch']
  %s0 = inlined_call_operand.vmem [shape: f32[8,10,1], index: 0, kind: input, shape index: {}]
  %s1 = inlined_call_operand.vmem [shape: f32[1,128], index: 1, kind: input, shape index: {}]
  %s2 = inlined_call_operand.vmem [shape: f32[1,128], index: 2, kind: input, shape index: {}]
  %s3 = inlined_call_operand.vmem [shape: f32[128,128], index: 3, kind: input, shape index: {}]
  %s4 = inlined_call_operand.vmem [shape: f32[8,10,128], index: 4, kind: output, shape index: {}]
  %s5 = sld [smem:[#allocation0]]
  $region26: #{vanilla_rnn_forward.1} parent=0
    _
  %s7 = ssub.s32 1, %s5
  %s8 = scalar_select 0, %s7, %s5
  // Predicated region
  $region2: #{vanilla_rnn_forward.1} parent=0 // pred_check
    _
  $region3: #{vanilla_rnn_forward.1} parent=0 // pred_check_branch
    %10 = sbr.rel (0) target = $region5
  $region4: #{vanilla_rnn_forward.1} parent=0 // pred_region
    _
  $region5: #{vanilla_rnn_forward.1} parent=0 // pred_fallthru
    _
  // Predicated region
  $region6: #{vanilla_rnn_forward.1} parent=0 // pred_check
    _
  $region7: #{vanilla_rnn_forward.1} parent=0 // pred_check_branch
    %12 = sbr.rel (0) target = $region9
  $region8: #{vanilla_rnn_forward.1} parent=0 // pred_region
    _
  $region9: #{vanilla_rnn_forward.1} parent=0 // pred_fallthru
    _
  // Predicated region
  $region10: #{vanilla_rnn_forward.1} parent=0 // pred_check
    _
  $region11: #{vanilla_rnn_forward.1} parent=0 // pred_check_branch
    %14 = sbr.rel (0) target = $region13
  $region12: #{vanilla_rnn_forward.1} parent=0 // pred_region
    _
  $region13: #{vanilla_rnn_forward.1} parent=0 // pred_fallthru
    _
  // Predicated region
  $region14: #{vanilla_rnn_forward.1} parent=0 // pred_check
    _
  $region15: #{vanilla_rnn_forward.1} parent=0 // pred_check_branch
    %16 = sbr.rel (0) target = $region17
  $region16: #{vanilla_rnn_forward.1} parent=0 // pred_region
    _
  $region17: #{vanilla_rnn_forward.1} parent=0 // pred_fallthru
    _
  %v17 = vld [vmem:[%s1] sm:$0x1]
  %v18 = vld [vmem:[%s2] sm:$0x1]
  %v19 = vld [vmem:[%s0] sm:$0x1]
  %v20 = vld [vmem:[%s0 + $0x10] sm:$0x1]
  %v21 = vld [vmem:[%s0 + $0x20] sm:$0x1]
  %v22 = vld [vmem:[%s0 + $0x30] sm:$0x1]
  %v23 = vld [vmem:[%s0 + $0x40] sm:$0x1]
  %v24 = vld [vmem:[%s0 + $0x50] sm:$0x1]
  %v25 = vld [vmem:[%s0 + $0x60] sm:$0x1]
  %v26 = vld [vmem:[%s0 + $0x70] sm:$0x1]
  %28 = vset.pattern.permute.xlu0 0
  %29 = vperm.xlu0 %28, %v19
  %v30 = vpop.permute.xlu0 %29
  %33 = vset.pattern.permute.xlu0 0
  %34 = vperm.xlu0 %33, %v20
  %v35 = vpop.permute.xlu0 %34
  %38 = vset.pattern.permute.xlu0 0
  %39 = vperm.xlu0 %38, %v21
  %v40 = vpop.permute.xlu0 %39
  %43 = vset.pattern.permute.xlu0 0
  %44 = vperm.xlu0 %43, %v22
  %v45 = vpop.permute.xlu0 %44
  %48 = vset.pattern.permute.xlu0 0
  %49 = vperm.xlu0 %48, %v23
  %v50 = vpop.permute.xlu0 %49
  %53 = vset.pattern.permute.xlu0 0
  %54 = vperm.xlu0 %53, %v24
  %v55 = vpop.permute.xlu0 %54
  %58 = vset.pattern.permute.xlu0 0
  %59 = vperm.xlu0 %58, %v25
  %v60 = vpop.permute.xlu0 %59
  %63 = vset.pattern.permute.xlu0 0
  %64 = vperm.xlu0 %63, %v26
  %v65 = vpop.permute.xlu0 %64
  %v68 = vlaneseq
  %v69 = vshrl.u32 %v68, 7
  %v70 = vsub.s32 0, %v69
  %v71 = vrot.slane %v17, %v70
  %v73 = vmul.f32 %v30, %v71
  %v74 = vmul.f32 %v35, %v71
  %v75 = vmul.f32 %v40, %v71
  %v76 = vmul.f32 %v45, %v71
  %v77 = vmul.f32 %v50, %v71
  %v78 = vmul.f32 %v55, %v71
  %v79 = vmul.f32 %v60, %v71
  %v80 = vmul.f32 %v65, %v71
  %v82 = vlaneseq
  %v83 = vshrl.u32 %v82, 7
  %v84 = vsub.s32 0, %v83
  %v85 = vrot.slane %v18, %v84
  %v87 = vadd.f32 %v73, %v85
  %v88 = vadd.f32 %v74, %v85
  %v89 = vadd.f32 %v75, %v85
  %v90 = vadd.f32 %v76, %v85
  %v91 = vadd.f32 %v77, %v85
  %v92 = vadd.f32 %v78, %v85
  %v93 = vadd.f32 %v79, %v85
  %v94 = vadd.f32 %v80, %v85
  %v95 = vmax.f32 %v87, 0.0
  %v96 = vmax.f32 %v88, 0.0
  %v97 = vmax.f32 %v89, 0.0
  %v98 = vmax.f32 %v90, 0.0
  %v99 = vmax.f32 %v91, 0.0
  %v100 = vmax.f32 %v92, 0.0
  %v101 = vmax.f32 %v93, 0.0
  %v102 = vmax.f32 %v94, 0.0
  %103 = vst [vmem:[%s4] sm:$0x1] %v95
  %104 = vst [vmem:[%s4 + $0x10] sm:$0x1] %v96
  %105 = vst [vmem:[%s4 + $0x20] sm:$0x1] %v97
  %106 = vst [vmem:[%s4 + $0x30] sm:$0x1] %v98
  %107 = vst [vmem:[%s4 + $0x40] sm:$0x1] %v99
  %108 = vst [vmem:[%s4 + $0x50] sm:$0x1] %v100
  %109 = vst [vmem:[%s4 + $0x60] sm:$0x1] %v101
  %110 = vst [vmem:[%s4 + $0x70] sm:$0x1] %v102
  %v111 = vld [vmem:[%s0 + $0x1] sm:$0x1]
  %v112 = vld [vmem:[%s0 + $0x11] sm:$0x1]
  %v113 = vld [vmem:[%s0 + $0x21] sm:$0x1]
  %v114 = vld [vmem:[%s0 + $0x31] sm:$0x1]
  %v115 = vld [vmem:[%s0 + $0x41] sm:$0x1]
  %v116 = vld [vmem:[%s0 + $0x51] sm:$0x1]
  %v117 = vld [vmem:[%s0 + $0x61] sm:$0x1]
  %v118 = vld [vmem:[%s0 + $0x71] sm:$0x1]
  %120 = vset.pattern.permute.xlu0 0
  %121 = vperm.xlu0 %120, %v111
  %v122 = vpop.permute.xlu0 %121
  %125 = vset.pattern.permute.xlu0 0
  %126 = vperm.xlu0 %125, %v112
  %v127 = vpop.permute.xlu0 %126
  %130 = vset.pattern.permute.xlu0 0
  %131 = vperm.xlu0 %130, %v113
  %v132 = vpop.permute.xlu0 %131
  %135 = vset.pattern.permute.xlu0 0
  %136 = vperm.xlu0 %135, %v114
  %v137 = vpop.permute.xlu0 %136
  %140 = vset.pattern.permute.xlu0 0
  %141 = vperm.xlu0 %140, %v115
  %v142 = vpop.permute.xlu0 %141
  %145 = vset.pattern.permute.xlu0 0
  %146 = vperm.xlu0 %145, %v116
  %v147 = vpop.permute.xlu0 %146
  %150 = vset.pattern.permute.xlu0 0
  %151 = vperm.xlu0 %150, %v117
  %v152 = vpop.permute.xlu0 %151
  %155 = vset.pattern.permute.xlu0 0
  %156 = vperm.xlu0 %155, %v118
  %v157 = vpop.permute.xlu0 %156
  %v159 = vmul.f32 %v122, %v71
  %v160 = vmul.f32 %v127, %v71
  %v161 = vmul.f32 %v132, %v71
  %v162 = vmul.f32 %v137, %v71
  %v163 = vmul.f32 %v142, %v71
  %v164 = vmul.f32 %v147, %v71
  %v165 = vmul.f32 %v152, %v71
  %v166 = vmul.f32 %v157, %v71
  %v167 = vadd.f32 %v159, %v85
  %v168 = vadd.f32 %v160, %v85
  %v169 = vadd.f32 %v161, %v85
  %v170 = vadd.f32 %v162, %v85
  %v171 = vadd.f32 %v163, %v85
  %v172 = vadd.f32 %v164, %v85
  %v173 = vadd.f32 %v165, %v85
  %v174 = vadd.f32 %v166, %v85
  %v175 = vld [vmem:[%s3] sm:$0xff]
  %v176 = vld [vmem:[%s3 + $0x8] sm:$0xff]
  %v177 = vld [vmem:[%s3 + $0x10] sm:$0xff]
  %v178 = vld [vmem:[%s3 + $0x18] sm:$0xff]
  %v179 = vld [vmem:[%s3 + $0x20] sm:$0xff]
  %v180 = vld [vmem:[%s3 + $0x28] sm:$0xff]
  %v181 = vld [vmem:[%s3 + $0x30] sm:$0xff]
  %v182 = vld [vmem:[%s3 + $0x38] sm:$0xff]
  %v183 = vld [vmem:[%s3 + $0x40] sm:$0xff]
  %v184 = vld [vmem:[%s3 + $0x48] sm:$0xff]
  %v185 = vld [vmem:[%s3 + $0x50] sm:$0xff]
  %v186 = vld [vmem:[%s3 + $0x58] sm:$0xff]
  %v187 = vld [vmem:[%s3 + $0x60] sm:$0xff]
  %v188 = vld [vmem:[%s3 + $0x68] sm:$0xff]
  %v189 = vld [vmem:[%s3 + $0x70] sm:$0xff]
  %v190 = vld [vmem:[%s3 + $0x78] sm:$0xff]
  %v199 = vrot.slane %v96, 7
  %vm200 = vcmask 1041409
  %v201 = vsel %vm200, %v199, %v95
  %v202 = vrot.slane %v97, 6
  %vm203 = vcmask 1042434
  %v204 = vsel %vm203, %v202, %v201
  %v205 = vrot.slane %v98, 5
  %vm206 = vcmask 1043459
  %v207 = vsel %vm206, %v205, %v204
  %v208 = vrot.slane %v99, 4
  %vm209 = vcmask 1044484
  %v210 = vsel %vm209, %v208, %v207
  %v211 = vrot.slane %v100, 3
  %vm212 = vcmask 1045509
  %v213 = vsel %vm212, %v211, %v210
  %v214 = vrot.slane %v101, 2
  %vm215 = vcmask 1046534
  %v216 = vsel %vm215, %v214, %v213
  %v217 = vrot.slane %v102, 1
  %vm218 = vcmask 1047559
  %v219 = vsel %vm218, %v217, %v216
  %221 = vmatprep.subr.mxu0 0.0
  %222 = vmatpush1.msra.mxu0 %v175
  %223 = vmatprep.subr.mxu0 0.0
  %224 = vmatpush1.msra.mxu0 %v176
  %225 = vmatprep.subr.mxu0 0.0
  %226 = vmatpush1.msra.mxu0 %v177
  %227 = vmatprep.subr.mxu0 0.0
  %228 = vmatpush1.msra.mxu0 %v178
  %229 = vmatprep.subr.mxu0 0.0
  %230 = vmatpush1.msra.mxu0 %v179
  %231 = vmatprep.subr.mxu0 0.0
  %232 = vmatpush1.msra.mxu0 %v180
  %233 = vmatprep.subr.mxu0 0.0
  %234 = vmatpush1.msra.mxu0 %v181
  %235 = vmatprep.subr.mxu0 0.0
  %236 = vmatpush1.msra.mxu0 %v182
  %237 = vmatprep.subr.mxu0 0.0
  %238 = vmatpush1.msra.mxu0 %v183
  %239 = vmatprep.subr.mxu0 0.0
  %240 = vmatpush1.msra.mxu0 %v184
  %241 = vmatprep.subr.mxu0 0.0
  %242 = vmatpush1.msra.mxu0 %v185
  %243 = vmatprep.subr.mxu0 0.0
  %244 = vmatpush1.msra.mxu0 %v186
  %245 = vmatprep.subr.mxu0 0.0
  %246 = vmatpush1.msra.mxu0 %v187
  %247 = vmatprep.subr.mxu0 0.0
  %248 = vmatpush1.msra.mxu0 %v188
  %249 = vmatprep.subr.mxu0 0.0
  %250 = vmatpush1.msra.mxu0 %v189
  %251 = vmatprep.subr.mxu0 0.0
  %252 = vmatpush1.msra.mxu0 %v190
  %253 = vmatprep.subr.mxu0 0.0
  %254 = vmatpush1.msra.mxu0 0.0
  %255 = vmatprep.subr.mxu0 0.0
  %256 = vmatpush1.msra.mxu0 0.0
  %257 = vmatprep.subr.mxu0 0.0
  %258 = vmatpush1.msra.mxu0 0.0
  %259 = vmatprep.subr.mxu0 0.0
  %260 = vmatpush1.msra.mxu0 0.0
  %261 = vmatprep.subr.mxu0 0.0
  %262 = vmatpush1.msra.mxu0 0.0
  %263 = vmatprep.subr.mxu0 0.0
  %264 = vmatpush1.msra.mxu0 0.0
  %265 = vmatprep.subr.mxu0 0.0
  %266 = vmatpush1.msra.mxu0 0.0
  %267 = vmatprep.subr.mxu0 0.0
  %268 = vmatpush1.msra.mxu0 0.0
  %269 = vmatprep.subr.mxu0 0.0
  %270 = vmatpush1.msra.mxu0 0.0
  %271 = vmatprep.subr.mxu0 0.0
  %272 = vmatpush1.msra.mxu0 0.0
  %273 = vmatprep.subr.mxu0 0.0
  %274 = vmatpush1.msra.mxu0 0.0
  %275 = vmatprep.subr.mxu0 0.0
  %276 = vmatpush1.msra.mxu0 0.0
  %277 = vmatprep.subr.mxu0 0.0
  %278 = vmatpush1.msra.mxu0 0.0
  %279 = vmatprep.subr.mxu0 0.0
  %280 = vmatpush1.msra.mxu0 0.0
  %281 = vmatprep.subr.mxu0 0.0
  %282 = vmatpush1.msra.mxu0 0.0
  %283 = vmatprep.subr.mxu0 0.0
  %284 = vmatpush1.msra.mxu0 0.0
  %285 = vmatprep.mubr.f32.mxu0 0.0
  %286 = vmatmul.mubr.f32.gmra.mrb[0].mxu0 %v219
  %v287 = vpop.f32.mrb[0].mxu0
  %v288 = vadd.f32 0.0, %v287
  %v289 = vpop.f32.mrb[0].mxu0
  %290 = vdwg.mxu0
  %v292 = vrot.slane %v288, 1
  %v293 = vrot.slane %v288, 2
  %v294 = vrot.slane %v288, 3
  %v295 = vrot.slane %v288, 4
  %v296 = vrot.slane %v288, 5
  %v297 = vrot.slane %v288, 6
  %v298 = vrot.slane %v288, 7
  %v307 = vadd.f32 %v167, %v288
  %v308 = vadd.f32 %v168, %v292
  %v309 = vadd.f32 %v169, %v293
  %v310 = vadd.f32 %v170, %v294
  %v311 = vadd.f32 %v171, %v295
  %v312 = vadd.f32 %v172, %v296
  %v313 = vadd.f32 %v173, %v297
  %v314 = vadd.f32 %v174, %v298
  %v315 = vmax.f32 %v307, 0.0
  %v316 = vmax.f32 %v308, 0.0
  %v317 = vmax.f32 %v309, 0.0
  %v318 = vmax.f32 %v310, 0.0
  %v319 = vmax.f32 %v311, 0.0
  %v320 = vmax.f32 %v312, 0.0
  %v321 = vmax.f32 %v313, 0.0
  %v322 = vmax.f32 %v314, 0.0
  %323 = vst [vmem:[%s4 + $0x1] sm:$0x1] %v315
  %324 = vst [vmem:[%s4 + $0x11] sm:$0x1] %v316
  %325 = vst [vmem:[%s4 + $0x21] sm:$0x1] %v317
  %326 = vst [vmem:[%s4 + $0x31] sm:$0x1] %v318
  %327 = vst [vmem:[%s4 + $0x41] sm:$0x1] %v319
  %328 = vst [vmem:[%s4 + $0x51] sm:$0x1] %v320
  %329 = vst [vmem:[%s4 + $0x61] sm:$0x1] %v321
  %330 = vst [vmem:[%s4 + $0x71] sm:$0x1] %v322
  %v331 = vld [vmem:[%s0 + $0x2] sm:$0x1]
  %v332 = vld [vmem:[%s0 + $0x12] sm:$0x1]
  %v333 = vld [vmem:[%s0 + $0x22] sm:$0x1]
  %v334 = vld [vmem:[%s0 + $0x32] sm:$0x1]
  %v335 = vld [vmem:[%s0 + $0x42] sm:$0x1]
  %v336 = vld [vmem:[%s0 + $0x52] sm:$0x1]
  %v337 = vld [vmem:[%s0 + $0x62] sm:$0x1]
  %v338 = vld [vmem:[%s0 + $0x72] sm:$0x1]
  %340 = vset.pattern.permute.xlu0 0
  %341 = vperm.xlu0 %340, %v331
  %v342 = vpop.permute.xlu0 %341
  %345 = vset.pattern.permute.xlu0 0
  %346 = vperm.xlu0 %345, %v332
  %v347 = vpop.permute.xlu0 %346
  %350 = vset.pattern.permute.xlu0 0
  %351 = vperm.xlu0 %350, %v333
  %v352 = vpop.permute.xlu0 %351
  %355 = vset.pattern.permute.xlu0 0
  %356 = vperm.xlu0 %355, %v334
  %v357 = vpop.permute.xlu0 %356
  %360 = vset.pattern.permute.xlu0 0
  %361 = vperm.xlu0 %360, %v335
  %v362 = vpop.permute.xlu0 %361
  %365 = vset.pattern.permute.xlu0 0
  %366 = vperm.xlu0 %365, %v336
  %v367 = vpop.permute.xlu0 %366
  %370 = vset.pattern.permute.xlu0 0
  %371 = vperm.xlu0 %370, %v337
  %v372 = vpop.permute.xlu0 %371
  %375 = vset.pattern.permute.xlu0 0
  %376 = vperm.xlu0 %375, %v338
  %v377 = vpop.permute.xlu0 %376
  %v379 = vmul.f32 %v342, %v71
  %v380 = vmul.f32 %v347, %v71
  %v381 = vmul.f32 %v352, %v71
  %v382 = vmul.f32 %v357, %v71
  %v383 = vmul.f32 %v362, %v71
  %v384 = vmul.f32 %v367, %v71
  %v385 = vmul.f32 %v372, %v71
  %v386 = vmul.f32 %v377, %v71
  %v387 = vadd.f32 %v379, %v85
  %v388 = vadd.f32 %v380, %v85
  %v389 = vadd.f32 %v381, %v85
  %v390 = vadd.f32 %v382, %v85
  %v391 = vadd.f32 %v383, %v85
  %v392 = vadd.f32 %v384, %v85
  %v393 = vadd.f32 %v385, %v85
  %v394 = vadd.f32 %v386, %v85
  %v395 = vld [vmem:[%s3] sm:$0xff]
  %v396 = vld [vmem:[%s3 + $0x8] sm:$0xff]
  %v397 = vld [vmem:[%s3 + $0x10] sm:$0xff]
  %v398 = vld [vmem:[%s3 + $0x18] sm:$0xff]
  %v399 = vld [vmem:[%s3 + $0x20] sm:$0xff]
  %v400 = vld [vmem:[%s3 + $0x28] sm:$0xff]
  %v401 = vld [vmem:[%s3 + $0x30] sm:$0xff]
  %v402 = vld [vmem:[%s3 + $0x38] sm:$0xff]
  %v403 = vld [vmem:[%s3 + $0x40] sm:$0xff]
  %v404 = vld [vmem:[%s3 + $0x48] sm:$0xff]
  %v405 = vld [vmem:[%s3 + $0x50] sm:$0xff]
  %v406 = vld [vmem:[%s3 + $0x58] sm:$0xff]
  %v407 = vld [vmem:[%s3 + $0x60] sm:$0xff]
  %v408 = vld [vmem:[%s3 + $0x68] sm:$0xff]
  %v409 = vld [vmem:[%s3 + $0x70] sm:$0xff]
  %v410 = vld [vmem:[%s3 + $0x78] sm:$0xff]
  %v419 = vrot.slane %v316, 7
  %v420 = vsel %vm200, %v419, %v315
  %v421 = vrot.slane %v317, 6
  %v422 = vsel %vm203, %v421, %v420
  %v423 = vrot.slane %v318, 5
  %v424 = vsel %vm206, %v423, %v422
  %v425 = vrot.slane %v319, 4
  %v426 = vsel %vm209, %v425, %v424
  %v427 = vrot.slane %v320, 3
  %v428 = vsel %vm212, %v427, %v426
  %v429 = vrot.slane %v321, 2
  %v430 = vsel %vm215, %v429, %v428
  %v431 = vrot.slane %v322, 1
  %v432 = vsel %vm218, %v431, %v430
  %434 = vmatprep.subr.mxu0 0.0
  %435 = vmatpush1.msra.mxu0 %v395
  %436 = vmatprep.subr.mxu0 0.0
  %437 = vmatpush1.msra.mxu0 %v396
  %438 = vmatprep.subr.mxu0 0.0
  %439 = vmatpush1.msra.mxu0 %v397
  %440 = vmatprep.subr.mxu0 0.0
  %441 = vmatpush1.msra.mxu0 %v398
  %442 = vmatprep.subr.mxu0 0.0
  %443 = vmatpush1.msra.mxu0 %v399
  %444 = vmatprep.subr.mxu0 0.0
  %445 = vmatpush1.msra.mxu0 %v400
  %446 = vmatprep.subr.mxu0 0.0
  %447 = vmatpush1.msra.mxu0 %v401
  %448 = vmatprep.subr.mxu0 0.0
  %449 = vmatpush1.msra.mxu0 %v402
  %450 = vmatprep.subr.mxu0 0.0
  %451 = vmatpush1.msra.mxu0 %v403
  %452 = vmatprep.subr.mxu0 0.0
  %453 = vmatpush1.msra.mxu0 %v404
  %454 = vmatprep.subr.mxu0 0.0
  %455 = vmatpush1.msra.mxu0 %v405
  %456 = vmatprep.subr.mxu0 0.0
  %457 = vmatpush1.msra.mxu0 %v406
  %458 = vmatprep.subr.mxu0 0.0
  %459 = vmatpush1.msra.mxu0 %v407
  %460 = vmatprep.subr.mxu0 0.0
  %461 = vmatpush1.msra.mxu0 %v408
  %462 = vmatprep.subr.mxu0 0.0
  %463 = vmatpush1.msra.mxu0 %v409
  %464 = vmatprep.subr.mxu0 0.0
  %465 = vmatpush1.msra.mxu0 %v410
  %466 = vmatprep.subr.mxu0 0.0
  %467 = vmatpush1.msra.mxu0 0.0
  %468 = vmatprep.subr.mxu0 0.0
  %469 = vmatpush1.msra.mxu0 0.0
  %470 = vmatprep.subr.mxu0 0.0
  %471 = vmatpush1.msra.mxu0 0.0
  %472 = vmatprep.subr.mxu0 0.0
  %473 = vmatpush1.msra.mxu0 0.0
  %474 = vmatprep.subr.mxu0 0.0
  %475 = vmatpush1.msra.mxu0 0.0
  %476 = vmatprep.subr.mxu0 0.0
  %477 = vmatpush1.msra.mxu0 0.0
  %478 = vmatprep.subr.mxu0 0.0
  %479 = vmatpush1.msra.mxu0 0.0
  %480 = vmatprep.subr.mxu0 0.0
  %481 = vmatpush1.msra.mxu0 0.0
  %482 = vmatprep.subr.mxu0 0.0
  %483 = vmatpush1.msra.mxu0 0.0
  %484 = vmatprep.subr.mxu0 0.0
  %485 = vmatpush1.msra.mxu0 0.0
  %486 = vmatprep.subr.mxu0 0.0
  %487 = vmatpush1.msra.mxu0 0.0
  %488 = vmatprep.subr.mxu0 0.0
  %489 = vmatpush1.msra.mxu0 0.0
  %490 = vmatprep.subr.mxu0 0.0
  %491 = vmatpush1.msra.mxu0 0.0
  %492 = vmatprep.subr.mxu0 0.0
  %493 = vmatpush1.msra.mxu0 0.0
  %494 = vmatprep.subr.mxu0 0.0
  %495 = vmatpush1.msra.mxu0 0.0
  %496 = vmatprep.subr.mxu0 0.0
  %497 = vmatpush1.msra.mxu0 0.0
  %498 = vmatprep.mubr.f32.mxu0 0.0
  %499 = vmatmul.mubr.f32.gmra.mrb[0].mxu0 %v432
  %v500 = vpop.f32.mrb[0].mxu0
  %v501 = vadd.f32 0.0, %v500
  %v502 = vpop.f32.mrb[0].mxu0
  %503 = vdwg.mxu0
  %v505 = vrot.slane %v501, 1
  %v506 = vrot.slane %v501, 2
  %v507 = vrot.slane %v501, 3
  %v508 = vrot.slane %v501, 4
  %v509 = vrot.slane %v501, 5
  %v510 = vrot.slane %v501, 6
  %v511 = vrot.slane %v501, 7
  %v520 = vadd.f32 %v387, %v501
  %v521 = vadd.f32 %v388, %v505
  %v522 = vadd.f32 %v389, %v506
  %v523 = vadd.f32 %v390, %v507
  %v524 = vadd.f32 %v391, %v508
  %v525 = vadd.f32 %v392, %v509
  %v526 = vadd.f32 %v393, %v510
  %v527 = vadd.f32 %v394, %v511
  %v528 = vmax.f32 %v520, 0.0
  %v529 = vmax.f32 %v521, 0.0
  %v530 = vmax.f32 %v522, 0.0
  %v531 = vmax.f32 %v523, 0.0
  %v532 = vmax.f32 %v524, 0.0
  %v533 = vmax.f32 %v525, 0.0
  %v534 = vmax.f32 %v526, 0.0
  %v535 = vmax.f32 %v527, 0.0
  %536 = vst [vmem:[%s4 + $0x2] sm:$0x1] %v528
  %537 = vst [vmem:[%s4 + $0x12] sm:$0x1] %v529
  %538 = vst [vmem:[%s4 + $0x22] sm:$0x1] %v530
  %539 = vst [vmem:[%s4 + $0x32] sm:$0x1] %v531
  %540 = vst [vmem:[%s4 + $0x42] sm:$0x1] %v532
  %541 = vst [vmem:[%s4 + $0x52] sm:$0x1] %v533
  %542 = vst [vmem:[%s4 + $0x62] sm:$0x1] %v534
  %543 = vst [vmem:[%s4 + $0x72] sm:$0x1] %v535
  %v544 = vld [vmem:[%s0 + $0x3] sm:$0x1]
  %v545 = vld [vmem:[%s0 + $0x13] sm:$0x1]
  %v546 = vld [vmem:[%s0 + $0x23] sm:$0x1]
  %v547 = vld [vmem:[%s0 + $0x33] sm:$0x1]
  %v548 = vld [vmem:[%s0 + $0x43] sm:$0x1]
  %v549 = vld [vmem:[%s0 + $0x53] sm:$0x1]
  %v550 = vld [vmem:[%s0 + $0x63] sm:$0x1]
  %v551 = vld [vmem:[%s0 + $0x73] sm:$0x1]
  %553 = vset.pattern.permute.xlu0 0
  %554 = vperm.xlu0 %553, %v544
  %v555 = vpop.permute.xlu0 %554
  %558 = vset.pattern.permute.xlu0 0
  %559 = vperm.xlu0 %558, %v545
  %v560 = vpop.permute.xlu0 %559
  %563 = vset.pattern.permute.xlu0 0
  %564 = vperm.xlu0 %563, %v546
  %v565 = vpop.permute.xlu0 %564
  %568 = vset.pattern.permute.xlu0 0
  %569 = vperm.xlu0 %568, %v547
  %v570 = vpop.permute.xlu0 %569
  %573 = vset.pattern.permute.xlu0 0
  %574 = vperm.xlu0 %573, %v548
  %v575 = vpop.permute.xlu0 %574
  %578 = vset.pattern.permute.xlu0 0
  %579 = vperm.xlu0 %578, %v549
  %v580 = vpop.permute.xlu0 %579
  %583 = vset.pattern.permute.xlu0 0
  %584 = vperm.xlu0 %583, %v550
  %v585 = vpop.permute.xlu0 %584
  %588 = vset.pattern.permute.xlu0 0
  %589 = vperm.xlu0 %588, %v551
  %v590 = vpop.permute.xlu0 %589
  %v592 = vmul.f32 %v555, %v71
  %v593 = vmul.f32 %v560, %v71
  %v594 = vmul.f32 %v565, %v71
  %v595 = vmul.f32 %v570, %v71
  %v596 = vmul.f32 %v575, %v71
  %v597 = vmul.f32 %v580, %v71
  %v598 = vmul.f32 %v585, %v71
  %v599 = vmul.f32 %v590, %v71
  %v600 = vadd.f32 %v592, %v85
  %v601 = vadd.f32 %v593, %v85
  %v602 = vadd.f32 %v594, %v85
  %v603 = vadd.f32 %v595, %v85
  %v604 = vadd.f32 %v596, %v85
  %v605 = vadd.f32 %v597, %v85
  %v606 = vadd.f32 %v598, %v85
  %v607 = vadd.f32 %v599, %v85
  %v608 = vld [vmem:[%s3] sm:$0xff]
  %v609 = vld [vmem:[%s3 + $0x8] sm:$0xff]
  %v610 = vld [vmem:[%s3 + $0x10] sm:$0xff]
  %v611 = vld [vmem:[%s3 + $0x18] sm:$0xff]
  %v612 = vld [vmem:[%s3 + $0x20] sm:$0xff]
  %v613 = vld [vmem:[%s3 + $0x28] sm:$0xff]
  %v614 = vld [vmem:[%s3 + $0x30] sm:$0xff]
  %v615 = vld [vmem:[%s3 + $0x38] sm:$0xff]
  %v616 = vld [vmem:[%s3 + $0x40] sm:$0xff]
  %v617 = vld [vmem:[%s3 + $0x48] sm:$0xff]
  %v618 = vld [vmem:[%s3 + $0x50] sm:$0xff]
  %v619 = vld [vmem:[%s3 + $0x58] sm:$0xff]
  %v620 = vld [vmem:[%s3 + $0x60] sm:$0xff]
  %v621 = vld [vmem:[%s3 + $0x68] sm:$0xff]
  %v622 = vld [vmem:[%s3 + $0x70] sm:$0xff]
  %v623 = vld [vmem:[%s3 + $0x78] sm:$0xff]
  %v632 = vrot.slane %v529, 7
  %v633 = vsel %vm200, %v632, %v528
  %v634 = vrot.slane %v530, 6
  %v635 = vsel %vm203, %v634, %v633
  %v636 = vrot.slane %v531, 5
  %v637 = vsel %vm206, %v636, %v635
  %v638 = vrot.slane %v532, 4
  %v639 = vsel %vm209, %v638, %v637
  %v640 = vrot.slane %v533, 3
  %v641 = vsel %vm212, %v640, %v639
  %v642 = vrot.slane %v534, 2
  %v643 = vsel %vm215, %v642, %v641
  %v644 = vrot.slane %v535, 1
  %v645 = vsel %vm218, %v644, %v643
  %647 = vmatprep.subr.mxu0 0.0
  %648 = vmatpush1.msra.mxu0 %v608
  %649 = vmatprep.subr.mxu0 0.0
  %650 = vmatpush1.msra.mxu0 %v609
  %651 = vmatprep.subr.mxu0 0.0
  %652 = vmatpush1.msra.mxu0 %v610
  %653 = vmatprep.subr.mxu0 0.0
  %654 = vmatpush1.msra.mxu0 %v611
  %655 = vmatprep.subr.mxu0 0.0
  %656 = vmatpush1.msra.mxu0 %v612
  %657 = vmatprep.subr.mxu0 0.0
  %658 = vmatpush1.msra.mxu0 %v613
  %659 = vmatprep.subr.mxu0 0.0
  %660 = vmatpush1.msra.mxu0 %v614
  %661 = vmatprep.subr.mxu0 0.0
  %662 = vmatpush1.msra.mxu0 %v615
  %663 = vmatprep.subr.mxu0 0.0
  %664 = vmatpush1.msra.mxu0 %v616
  %665 = vmatprep.subr.mxu0 0.0
  %666 = vmatpush1.msra.mxu0 %v617
  %667 = vmatprep.subr.mxu0 0.0
  %668 = vmatpush1.msra.mxu0 %v618
  %669 = vmatprep.subr.mxu0 0.0
  %670 = vmatpush1.msra.mxu0 %v619
  %671 = vmatprep.subr.mxu0 0.0
  %672 = vmatpush1.msra.mxu0 %v620
  %673 = vmatprep.subr.mxu0 0.0
  %674 = vmatpush1.msra.mxu0 %v621
  %675 = vmatprep.subr.mxu0 0.0
  %676 = vmatpush1.msra.mxu0 %v622
  %677 = vmatprep.subr.mxu0 0.0
  %678 = vmatpush1.msra.mxu0 %v623
  %679 = vmatprep.subr.mxu0 0.0
  %680 = vmatpush1.msra.mxu0 0.0
  %681 = vmatprep.subr.mxu0 0.0
  %682 = vmatpush1.msra.mxu0 0.0
  %683 = vmatprep.subr.mxu0 0.0
  %684 = vmatpush1.msra.mxu0 0.0
  %685 = vmatprep.subr.mxu0 0.0
  %686 = vmatpush1.msra.mxu0 0.0
  %687 = vmatprep.subr.mxu0 0.0
  %688 = vmatpush1.msra.mxu0 0.0
  %689 = vmatprep.subr.mxu0 0.0
  %690 = vmatpush1.msra.mxu0 0.0
  %691 = vmatprep.subr.mxu0 0.0
  %692 = vmatpush1.msra.mxu0 0.0
  %693 = vmatprep.subr.mxu0 0.0
  %694 = vmatpush1.msra.mxu0 0.0
  %695 = vmatprep.subr.mxu0 0.0
  %696 = vmatpush1.msra.mxu0 0.0
  %697 = vmatprep.subr.mxu0 0.0
  %698 = vmatpush1.msra.mxu0 0.0
  %699 = vmatprep.subr.mxu0 0.0
  %700 = vmatpush1.msra.mxu0 0.0
  %701 = vmatprep.subr.mxu0 0.0
  %702 = vmatpush1.msra.mxu0 0.0
  %703 = vmatprep.subr.mxu0 0.0
  %704 = vmatpush1.msra.mxu0 0.0
  %705 = vmatprep.subr.mxu0 0.0
  %706 = vmatpush1.msra.mxu0 0.0
  %707 = vmatprep.subr.mxu0 0.0
  %708 = vmatpush1.msra.mxu0 0.0
  %709 = vmatprep.subr.mxu0 0.0
  %710 = vmatpush1.msra.mxu0 0.0
  %711 = vmatprep.mubr.f32.mxu0 0.0
  %712 = vmatmul.mubr.f32.gmra.mrb[0].mxu0 %v645
  %v713 = vpop.f32.mrb[0].mxu0
  %v714 = vadd.f32 0.0, %v713
  %v715 = vpop.f32.mrb[0].mxu0
  %716 = vdwg.mxu0
  %v718 = vrot.slane %v714, 1
  %v719 = vrot.slane %v714, 2
  %v720 = vrot.slane %v714, 3
  %v721 = vrot.slane %v714, 4
  %v722 = vrot.slane %v714, 5
  %v723 = vrot.slane %v714, 6
  %v724 = vrot.slane %v714, 7
  %v733 = vadd.f32 %v600, %v714
  %v734 = vadd.f32 %v601, %v718
  %v735 = vadd.f32 %v602, %v719
  %v736 = vadd.f32 %v603, %v720
  %v737 = vadd.f32 %v604, %v721
  %v738 = vadd.f32 %v605, %v722
  %v739 = vadd.f32 %v606, %v723
  %v740 = vadd.f32 %v607, %v724
  %v741 = vmax.f32 %v733, 0.0
  %v742 = vmax.f32 %v734, 0.0
  %v743 = vmax.f32 %v735, 0.0
  %v744 = vmax.f32 %v736, 0.0
  %v745 = vmax.f32 %v737, 0.0
  %v746 = vmax.f32 %v738, 0.0
  %v747 = vmax.f32 %v739, 0.0
  %v748 = vmax.f32 %v740, 0.0
  %749 = vst [vmem:[%s4 + $0x3] sm:$0x1] %v741
  %750 = vst [vmem:[%s4 + $0x13] sm:$0x1] %v742
  %751 = vst [vmem:[%s4 + $0x23] sm:$0x1] %v743
  %752 = vst [vmem:[%s4 + $0x33] sm:$0x1] %v744
  %753 = vst [vmem:[%s4 + $0x43] sm:$0x1] %v745
  %754 = vst [vmem:[%s4 + $0x53] sm:$0x1] %v746
  %755 = vst [vmem:[%s4 + $0x63] sm:$0x1] %v747
  %756 = vst [vmem:[%s4 + $0x73] sm:$0x1] %v748
  %v757 = vld [vmem:[%s0 + $0x4] sm:$0x1]
  %v758 = vld [vmem:[%s0 + $0x14] sm:$0x1]
  %v759 = vld [vmem:[%s0 + $0x24] sm:$0x1]
  %v760 = vld [vmem:[%s0 + $0x34] sm:$0x1]
  %v761 = vld [vmem:[%s0 + $0x44] sm:$0x1]
  %v762 = vld [vmem:[%s0 + $0x54] sm:$0x1]
  %v763 = vld [vmem:[%s0 + $0x64] sm:$0x1]
  %v764 = vld [vmem:[%s0 + $0x74] sm:$0x1]
  %766 = vset.pattern.permute.xlu0 0
  %767 = vperm.xlu0 %766, %v757
  %v768 = vpop.permute.xlu0 %767
  %771 = vset.pattern.permute.xlu0 0
  %772 = vperm.xlu0 %771, %v758
  %v773 = vpop.permute.xlu0 %772
  %776 = vset.pattern.permute.xlu0 0
  %777 = vperm.xlu0 %776, %v759
  %v778 = vpop.permute.xlu0 %777
  %781 = vset.pattern.permute.xlu0 0
  %782 = vperm.xlu0 %781, %v760
  %v783 = vpop.permute.xlu0 %782
  %786 = vset.pattern.permute.xlu0 0
  %787 = vperm.xlu0 %786, %v761
  %v788 = vpop.permute.xlu0 %787
  %791 = vset.pattern.permute.xlu0 0
  %792 = vperm.xlu0 %791, %v762
  %v793 = vpop.permute.xlu0 %792
  %796 = vset.pattern.permute.xlu0 0
  %797 = vperm.xlu0 %796, %v763
  %v798 = vpop.permute.xlu0 %797
  %801 = vset.pattern.permute.xlu0 0
  %802 = vperm.xlu0 %801, %v764
  %v803 = vpop.permute.xlu0 %802
  %v805 = vmul.f32 %v768, %v71
  %v806 = vmul.f32 %v773, %v71
  %v807 = vmul.f32 %v778, %v71
  %v808 = vmul.f32 %v783, %v71
  %v809 = vmul.f32 %v788, %v71
  %v810 = vmul.f32 %v793, %v71
  %v811 = vmul.f32 %v798, %v71
  %v812 = vmul.f32 %v803, %v71
  %v813 = vadd.f32 %v805, %v85
  %v814 = vadd.f32 %v806, %v85
  %v815 = vadd.f32 %v807, %v85
  %v816 = vadd.f32 %v808, %v85
  %v817 = vadd.f32 %v809, %v85
  %v818 = vadd.f32 %v810, %v85
  %v819 = vadd.f32 %v811, %v85
  %v820 = vadd.f32 %v812, %v85
  %v821 = vld [vmem:[%s3] sm:$0xff]
  %v822 = vld [vmem:[%s3 + $0x8] sm:$0xff]
  %v823 = vld [vmem:[%s3 + $0x10] sm:$0xff]
  %v824 = vld [vmem:[%s3 + $0x18] sm:$0xff]
  %v825 = vld [vmem:[%s3 + $0x20] sm:$0xff]
  %v826 = vld [vmem:[%s3 + $0x28] sm:$0xff]
  %v827 = vld [vmem:[%s3 + $0x30] sm:$0xff]
  %v828 = vld [vmem:[%s3 + $0x38] sm:$0xff]
  %v829 = vld [vmem:[%s3 + $0x40] sm:$0xff]
  %v830 = vld [vmem:[%s3 + $0x48] sm:$0xff]
  %v831 = vld [vmem:[%s3 + $0x50] sm:$0xff]
  %v832 = vld [vmem:[%s3 + $0x58] sm:$0xff]
  %v833 = vld [vmem:[%s3 + $0x60] sm:$0xff]
  %v834 = vld [vmem:[%s3 + $0x68] sm:$0xff]
  %v835 = vld [vmem:[%s3 + $0x70] sm:$0xff]
  %v836 = vld [vmem:[%s3 + $0x78] sm:$0xff]
  %v845 = vrot.slane %v742, 7
  %v846 = vsel %vm200, %v845, %v741
  %v847 = vrot.slane %v743, 6
  %v848 = vsel %vm203, %v847, %v846
  %v849 = vrot.slane %v744, 5
  %v850 = vsel %vm206, %v849, %v848
  %v851 = vrot.slane %v745, 4
  %v852 = vsel %vm209, %v851, %v850
  %v853 = vrot.slane %v746, 3
  %v854 = vsel %vm212, %v853, %v852
  %v855 = vrot.slane %v747, 2
  %v856 = vsel %vm215, %v855, %v854
  %v857 = vrot.slane %v748, 1
  %v858 = vsel %vm218, %v857, %v856
  %860 = vmatprep.subr.mxu0 0.0
  %861 = vmatpush1.msra.mxu0 %v821
  %862 = vmatprep.subr.mxu0 0.0
  %863 = vmatpush1.msra.mxu0 %v822
  %864 = vmatprep.subr.mxu0 0.0
  %865 = vmatpush1.msra.mxu0 %v823
  %866 = vmatprep.subr.mxu0 0.0
  %867 = vmatpush1.msra.mxu0 %v824
  %868 = vmatprep.subr.mxu0 0.0
  %869 = vmatpush1.msra.mxu0 %v825
  %870 = vmatprep.subr.mxu0 0.0
  %871 = vmatpush1.msra.mxu0 %v826
  %872 = vmatprep.subr.mxu0 0.0
  %873 = vmatpush1.msra.mxu0 %v827
  %874 = vmatprep.subr.mxu0 0.0
  %875 = vmatpush1.msra.mxu0 %v828
  %876 = vmatprep.subr.mxu0 0.0
  %877 = vmatpush1.msra.mxu0 %v829
  %878 = vmatprep.subr.mxu0 0.0
  %879 = vmatpush1.msra.mxu0 %v830
  %880 = vmatprep.subr.mxu0 0.0
  %881 = vmatpush1.msra.mxu0 %v831
  %882 = vmatprep.subr.mxu0 0.0
  %883 = vmatpush1.msra.mxu0 %v832
  %884 = vmatprep.subr.mxu0 0.0
  %885 = vmatpush1.msra.mxu0 %v833
  %886 = vmatprep.subr.mxu0 0.0
  %887 = vmatpush1.msra.mxu0 %v834
  %888 = vmatprep.subr.mxu0 0.0
  %889 = vmatpush1.msra.mxu0 %v835
  %890 = vmatprep.subr.mxu0 0.0
  %891 = vmatpush1.msra.mxu0 %v836
  %892 = vmatprep.subr.mxu0 0.0
  %893 = vmatpush1.msra.mxu0 0.0
  %894 = vmatprep.subr.mxu0 0.0
  %895 = vmatpush1.msra.mxu0 0.0
  %896 = vmatprep.subr.mxu0 0.0
  %897 = vmatpush1.msra.mxu0 0.0
  %898 = vmatprep.subr.mxu0 0.0
  %899 = vmatpush1.msra.mxu0 0.0
  %900 = vmatprep.subr.mxu0 0.0
  %901 = vmatpush1.msra.mxu0 0.0
  %902 = vmatprep.subr.mxu0 0.0
  %903 = vmatpush1.msra.mxu0 0.0
  %904 = vmatprep.subr.mxu0 0.0
  %905 = vmatpush1.msra.mxu0 0.0
  %906 = vmatprep.subr.mxu0 0.0
  %907 = vmatpush1.msra.mxu0 0.0
  %908 = vmatprep.subr.mxu0 0.0
  %909 = vmatpush1.msra.mxu0 0.0
  %910 = vmatprep.subr.mxu0 0.0
  %911 = vmatpush1.msra.mxu0 0.0
  %912 = vmatprep.subr.mxu0 0.0
  %913 = vmatpush1.msra.mxu0 0.0
  %914 = vmatprep.subr.mxu0 0.0
  %915 = vmatpush1.msra.mxu0 0.0
  %916 = vmatprep.subr.mxu0 0.0
  %917 = vmatpush1.msra.mxu0 0.0
  %918 = vmatprep.subr.mxu0 0.0
  %919 = vmatpush1.msra.mxu0 0.0
  %920 = vmatprep.subr.mxu0 0.0
  %921 = vmatpush1.msra.mxu0 0.0
  %922 = vmatprep.subr.mxu0 0.0
  %923 = vmatpush1.msra.mxu0 0.0
  %924 = vmatprep.mubr.f32.mxu0 0.0
  %925 = vmatmul.mubr.f32.gmra.mrb[0].mxu0 %v858
  %v926 = vpop.f32.mrb[0].mxu0
  %v927 = vadd.f32 0.0, %v926
  %v928 = vpop.f32.mrb[0].mxu0
  %929 = vdwg.mxu0
  %v931 = vrot.slane %v927, 1
  %v932 = vrot.slane %v927, 2
  %v933 = vrot.slane %v927, 3
  %v934 = vrot.slane %v927, 4
  %v935 = vrot.slane %v927, 5
  %v936 = vrot.slane %v927, 6
  %v937 = vrot.slane %v927, 7
  %v946 = vadd.f32 %v813, %v927
  %v947 = vadd.f32 %v814, %v931
  %v948 = vadd.f32 %v815, %v932
  %v949 = vadd.f32 %v816, %v933
  %v950 = vadd.f32 %v817, %v934
  %v951 = vadd.f32 %v818, %v935
  %v952 = vadd.f32 %v819, %v936
  %v953 = vadd.f32 %v820, %v937
  %v954 = vmax.f32 %v946, 0.0
  %v955 = vmax.f32 %v947, 0.0
  %v956 = vmax.f32 %v948, 0.0
  %v957 = vmax.f32 %v949, 0.0
  %v958 = vmax.f32 %v950, 0.0
  %v959 = vmax.f32 %v951, 0.0
  %v960 = vmax.f32 %v952, 0.0
  %v961 = vmax.f32 %v953, 0.0
  %962 = vst [vmem:[%s4 + $0x4] sm:$0x1] %v954
  %963 = vst [vmem:[%s4 + $0x14] sm:$0x1] %v955
  %964 = vst [vmem:[%s4 + $0x24] sm:$0x1] %v956
  %965 = vst [vmem:[%s4 + $0x34] sm:$0x1] %v957
  %966 = vst [vmem:[%s4 + $0x44] sm:$0x1] %v958
  %967 = vst [vmem:[%s4 + $0x54] sm:$0x1] %v959
  %968 = vst [vmem:[%s4 + $0x64] sm:$0x1] %v960
  %969 = vst [vmem:[%s4 + $0x74] sm:$0x1] %v961
  %v970 = vld [vmem:[%s0 + $0x5] sm:$0x1]
  %v971 = vld [vmem:[%s0 + $0x15] sm:$0x1]
  %v972 = vld [vmem:[%s0 + $0x25] sm:$0x1]
  %v973 = vld [vmem:[%s0 + $0x35] sm:$0x1]
  %v974 = vld [vmem:[%s0 + $0x45] sm:$0x1]
  %v975 = vld [vmem:[%s0 + $0x55] sm:$0x1]
  %v976 = vld [vmem:[%s0 + $0x65] sm:$0x1]
  %v977 = vld [vmem:[%s0 + $0x75] sm:$0x1]
  %979 = vset.pattern.permute.xlu0 0
  %980 = vperm.xlu0 %979, %v970
  %v981 = vpop.permute.xlu0 %980
  %984 = vset.pattern.permute.xlu0 0
  %985 = vperm.xlu0 %984, %v971
  %v986 = vpop.permute.xlu0 %985
  %989 = vset.pattern.permute.xlu0 0
  %990 = vperm.xlu0 %989, %v972
  %v991 = vpop.permute.xlu0 %990
  %994 = vset.pattern.permute.xlu0 0
  %995 = vperm.xlu0 %994, %v973
  %v996 = vpop.permute.xlu0 %995
  %999 = vset.pattern.permute.xlu0 0
  %1000 = vperm.xlu0 %999, %v974
  %v1001 = vpop.permute.xlu0 %1000
  %1004 = vset.pattern.permute.xlu0 0
  %1005 = vperm.xlu0 %1004, %v975
  %v1006 = vpop.permute.xlu0 %1005
  %1009 = vset.pattern.permute.xlu0 0
  %1010 = vperm.xlu0 %1009, %v976
  %v1011 = vpop.permute.xlu0 %1010
  %1014 = vset.pattern.permute.xlu0 0
  %1015 = vperm.xlu0 %1014, %v977
  %v1016 = vpop.permute.xlu0 %1015
  %v1018 = vmul.f32 %v981, %v71
  %v1019 = vmul.f32 %v986, %v71
  %v1020 = vmul.f32 %v991, %v71
  %v1021 = vmul.f32 %v996, %v71
  %v1022 = vmul.f32 %v1001, %v71
  %v1023 = vmul.f32 %v1006, %v71
  %v1024 = vmul.f32 %v1011, %v71
  %v1025 = vmul.f32 %v1016, %v71
  %v1026 = vadd.f32 %v1018, %v85
  %v1027 = vadd.f32 %v1019, %v85
  %v1028 = vadd.f32 %v1020, %v85
  %v1029 = vadd.f32 %v1021, %v85
  %v1030 = vadd.f32 %v1022, %v85
  %v1031 = vadd.f32 %v1023, %v85
  %v1032 = vadd.f32 %v1024, %v85
  %v1033 = vadd.f32 %v1025, %v85
  %v1034 = vld [vmem:[%s3] sm:$0xff]
  %v1035 = vld [vmem:[%s3 + $0x8] sm:$0xff]
  %v1036 = vld [vmem:[%s3 + $0x10] sm:$0xff]
  %v1037 = vld [vmem:[%s3 + $0x18] sm:$0xff]
  %v1038 = vld [vmem:[%s3 + $0x20] sm:$0xff]
  %v1039 = vld [vmem:[%s3 + $0x28] sm:$0xff]
  %v1040 = vld [vmem:[%s3 + $0x30] sm:$0xff]
  %v1041 = vld [vmem:[%s3 + $0x38] sm:$0xff]
  %v1042 = vld [vmem:[%s3 + $0x40] sm:$0xff]
  %v1043 = vld [vmem:[%s3 + $0x48] sm:$0xff]
  %v1044 = vld [vmem:[%s3 + $0x50] sm:$0xff]
  %v1045 = vld [vmem:[%s3 + $0x58] sm:$0xff]
  %v1046 = vld [vmem:[%s3 + $0x60] sm:$0xff]
  %v1047 = vld [vmem:[%s3 + $0x68] sm:$0xff]
  %v1048 = vld [vmem:[%s3 + $0x70] sm:$0xff]
  %v1049 = vld [vmem:[%s3 + $0x78] sm:$0xff]
  %v1058 = vrot.slane %v955, 7
  %v1059 = vsel %vm200, %v1058, %v954
  %v1060 = vrot.slane %v956, 6
  %v1061 = vsel %vm203, %v1060, %v1059
  %v1062 = vrot.slane %v957, 5
  %v1063 = vsel %vm206, %v1062, %v1061
  %v1064 = vrot.slane %v958, 4
  %v1065 = vsel %vm209, %v1064, %v1063
  %v1066 = vrot.slane %v959, 3
  %v1067 = vsel %vm212, %v1066, %v1065
  %v1068 = vrot.slane %v960, 2
  %v1069 = vsel %vm215, %v1068, %v1067
  %v1070 = vrot.slane %v961, 1
  %v1071 = vsel %vm218, %v1070, %v1069
  %1073 = vmatprep.subr.mxu0 0.0
  %1074 = vmatpush1.msra.mxu0 %v1034
  %1075 = vmatprep.subr.mxu0 0.0
  %1076 = vmatpush1.msra.mxu0 %v1035
  %1077 = vmatprep.subr.mxu0 0.0
  %1078 = vmatpush1.msra.mxu0 %v1036
  %1079 = vmatprep.subr.mxu0 0.0
  %1080 = vmatpush1.msra.mxu0 %v1037
  %1081 = vmatprep.subr.mxu0 0.0
  %1082 = vmatpush1.msra.mxu0 %v1038
  %1083 = vmatprep.subr.mxu0 0.0
  %1084 = vmatpush1.msra.mxu0 %v1039
  %1085 = vmatprep.subr.mxu0 0.0
  %1086 = vmatpush1.msra.mxu0 %v1040
  %1087 = vmatprep.subr.mxu0 0.0
  %1088 = vmatpush1.msra.mxu0 %v1041
  %1089 = vmatprep.subr.mxu0 0.0
  %1090 = vmatpush1.msra.mxu0 %v1042
  %1091 = vmatprep.subr.mxu0 0.0
  %1092 = vmatpush1.msra.mxu0 %v1043
  %1093 = vmatprep.subr.mxu0 0.0
  %1094 = vmatpush1.msra.mxu0 %v1044
  %1095 = vmatprep.subr.mxu0 0.0
  %1096 = vmatpush1.msra.mxu0 %v1045
  %1097 = vmatprep.subr.mxu0 0.0
  %1098 = vmatpush1.msra.mxu0 %v1046
  %1099 = vmatprep.subr.mxu0 0.0
  %1100 = vmatpush1.msra.mxu0 %v1047
  %1101 = vmatprep.subr.mxu0 0.0
  %1102 = vmatpush1.msra.mxu0 %v1048
  %1103 = vmatprep.subr.mxu0 0.0
  %1104 = vmatpush1.msra.mxu0 %v1049
  %1105 = vmatprep.subr.mxu0 0.0
  %1106 = vmatpush1.msra.mxu0 0.0
  %1107 = vmatprep.subr.mxu0 0.0
  %1108 = vmatpush1.msra.mxu0 0.0
  %1109 = vmatprep.subr.mxu0 0.0
  %1110 = vmatpush1.msra.mxu0 0.0
  %1111 = vmatprep.subr.mxu0 0.0
  %1112 = vmatpush1.msra.mxu0 0.0
  %1113 = vmatprep.subr.mxu0 0.0
  %1114 = vmatpush1.msra.mxu0 0.0
  %1115 = vmatprep.subr.mxu0 0.0
  %1116 = vmatpush1.msra.mxu0 0.0
  %1117 = vmatprep.subr.mxu0 0.0
  %1118 = vmatpush1.msra.mxu0 0.0
  %1119 = vmatprep.subr.mxu0 0.0
  %1120 = vmatpush1.msra.mxu0 0.0
  %1121 = vmatprep.subr.mxu0 0.0
  %1122 = vmatpush1.msra.mxu0 0.0
  %1123 = vmatprep.subr.mxu0 0.0
  %1124 = vmatpush1.msra.mxu0 0.0
  %1125 = vmatprep.subr.mxu0 0.0
  %1126 = vmatpush1.msra.mxu0 0.0
  %1127 = vmatprep.subr.mxu0 0.0
  %1128 = vmatpush1.msra.mxu0 0.0
  %1129 = vmatprep.subr.mxu0 0.0
  %1130 = vmatpush1.msra.mxu0 0.0
  %1131 = vmatprep.subr.mxu0 0.0
  %1132 = vmatpush1.msra.mxu0 0.0
  %1133 = vmatprep.subr.mxu0 0.0
  %1134 = vmatpush1.msra.mxu0 0.0
  %1135 = vmatprep.subr.mxu0 0.0
  %1136 = vmatpush1.msra.mxu0 0.0
  %1137 = vmatprep.mubr.f32.mxu0 0.0
  %1138 = vmatmul.mubr.f32.gmra.mrb[0].mxu0 %v1071
  %v1139 = vpop.f32.mrb[0].mxu0
  %v1140 = vadd.f32 0.0, %v1139
  %v1141 = vpop.f32.mrb[0].mxu0
  %1142 = vdwg.mxu0
  %v1144 = vrot.slane %v1140, 1
  %v1145 = vrot.slane %v1140, 2
  %v1146 = vrot.slane %v1140, 3
  %v1147 = vrot.slane %v1140, 4
  %v1148 = vrot.slane %v1140, 5
  %v1149 = vrot.slane %v1140, 6
  %v1150 = vrot.slane %v1140, 7
  %v1159 = vadd.f32 %v1026, %v1140
  %v1160 = vadd.f32 %v1027, %v1144
  %v1161 = vadd.f32 %v1028, %v1145
  %v1162 = vadd.f32 %v1029, %v1146
  %v1163 = vadd.f32 %v1030, %v1147
  %v1164 = vadd.f32 %v1031, %v1148
  %v1165 = vadd.f32 %v1032, %v1149
  %v1166 = vadd.f32 %v1033, %v1150
  %v1167 = vmax.f32 %v1159, 0.0
  %v1168 = vmax.f32 %v1160, 0.0
  %v1169 = vmax.f32 %v1161, 0.0
  %v1170 = vmax.f32 %v1162, 0.0
  %v1171 = vmax.f32 %v1163, 0.0
  %v1172 = vmax.f32 %v1164, 0.0
  %v1173 = vmax.f32 %v1165, 0.0
  %v1174 = vmax.f32 %v1166, 0.0
  %1175 = vst [vmem:[%s4 + $0x5] sm:$0x1] %v1167
  %1176 = vst [vmem:[%s4 + $0x15] sm:$0x1] %v1168
  %1177 = vst [vmem:[%s4 + $0x25] sm:$0x1] %v1169
  %1178 = vst [vmem:[%s4 + $0x35] sm:$0x1] %v1170
  %1179 = vst [vmem:[%s4 + $0x45] sm:$0x1] %v1171
  %1180 = vst [vmem:[%s4 + $0x55] sm:$0x1] %v1172
  %1181 = vst [vmem:[%s4 + $0x65] sm:$0x1] %v1173
  %1182 = vst [vmem:[%s4 + $0x75] sm:$0x1] %v1174
  %v1183 = vld [vmem:[%s0 + $0x6] sm:$0x1]
  %v1184 = vld [vmem:[%s0 + $0x16] sm:$0x1]
  %v1185 = vld [vmem:[%s0 + $0x26] sm:$0x1]
  %v1186 = vld [vmem:[%s0 + $0x36] sm:$0x1]
  %v1187 = vld [vmem:[%s0 + $0x46] sm:$0x1]
  %v1188 = vld [vmem:[%s0 + $0x56] sm:$0x1]
  %v1189 = vld [vmem:[%s0 + $0x66] sm:$0x1]
  %v1190 = vld [vmem:[%s0 + $0x76] sm:$0x1]
  %1192 = vset.pattern.permute.xlu0 0
  %1193 = vperm.xlu0 %1192, %v1183
  %v1194 = vpop.permute.xlu0 %1193
  %1197 = vset.pattern.permute.xlu0 0
  %1198 = vperm.xlu0 %1197, %v1184
  %v1199 = vpop.permute.xlu0 %1198
  %1202 = vset.pattern.permute.xlu0 0
  %1203 = vperm.xlu0 %1202, %v1185
  %v1204 = vpop.permute.xlu0 %1203
  %1207 = vset.pattern.permute.xlu0 0
  %1208 = vperm.xlu0 %1207, %v1186
  %v1209 = vpop.permute.xlu0 %1208
  %1212 = vset.pattern.permute.xlu0 0
  %1213 = vperm.xlu0 %1212, %v1187
  %v1214 = vpop.permute.xlu0 %1213
  %1217 = vset.pattern.permute.xlu0 0
  %1218 = vperm.xlu0 %1217, %v1188
  %v1219 = vpop.permute.xlu0 %1218
  %1222 = vset.pattern.permute.xlu0 0
  %1223 = vperm.xlu0 %1222, %v1189
  %v1224 = vpop.permute.xlu0 %1223
  %1227 = vset.pattern.permute.xlu0 0
  %1228 = vperm.xlu0 %1227, %v1190
  %v1229 = vpop.permute.xlu0 %1228
  %v1231 = vmul.f32 %v1194, %v71
  %v1232 = vmul.f32 %v1199, %v71
  %v1233 = vmul.f32 %v1204, %v71
  %v1234 = vmul.f32 %v1209, %v71
  %v1235 = vmul.f32 %v1214, %v71
  %v1236 = vmul.f32 %v1219, %v71
  %v1237 = vmul.f32 %v1224, %v71
  %v1238 = vmul.f32 %v1229, %v71
  %v1239 = vadd.f32 %v1231, %v85
  %v1240 = vadd.f32 %v1232, %v85
  %v1241 = vadd.f32 %v1233, %v85
  %v1242 = vadd.f32 %v1234, %v85
  %v1243 = vadd.f32 %v1235, %v85
  %v1244 = vadd.f32 %v1236, %v85
  %v1245 = vadd.f32 %v1237, %v85
  %v1246 = vadd.f32 %v1238, %v85
  %v1247 = vld [vmem:[%s3] sm:$0xff]
  %v1248 = vld [vmem:[%s3 + $0x8] sm:$0xff]
  %v1249 = vld [vmem:[%s3 + $0x10] sm:$0xff]
  %v1250 = vld [vmem:[%s3 + $0x18] sm:$0xff]
  %v1251 = vld [vmem:[%s3 + $0x20] sm:$0xff]
  %v1252 = vld [vmem:[%s3 + $0x28] sm:$0xff]
  %v1253 = vld [vmem:[%s3 + $0x30] sm:$0xff]
  %v1254 = vld [vmem:[%s3 + $0x38] sm:$0xff]
  %v1255 = vld [vmem:[%s3 + $0x40] sm:$0xff]
  %v1256 = vld [vmem:[%s3 + $0x48] sm:$0xff]
  %v1257 = vld [vmem:[%s3 + $0x50] sm:$0xff]
  %v1258 = vld [vmem:[%s3 + $0x58] sm:$0xff]
  %v1259 = vld [vmem:[%s3 + $0x60] sm:$0xff]
  %v1260 = vld [vmem:[%s3 + $0x68] sm:$0xff]
  %v1261 = vld [vmem:[%s3 + $0x70] sm:$0xff]
  %v1262 = vld [vmem:[%s3 + $0x78] sm:$0xff]
  %v1271 = vrot.slane %v1168, 7
  %v1272 = vsel %vm200, %v1271, %v1167
  %v1273 = vrot.slane %v1169, 6
  %v1274 = vsel %vm203, %v1273, %v1272
  %v1275 = vrot.slane %v1170, 5
  %v1276 = vsel %vm206, %v1275, %v1274
  %v1277 = vrot.slane %v1171, 4
  %v1278 = vsel %vm209, %v1277, %v1276
  %v1279 = vrot.slane %v1172, 3
  %v1280 = vsel %vm212, %v1279, %v1278
  %v1281 = vrot.slane %v1173, 2
  %v1282 = vsel %vm215, %v1281, %v1280
  %v1283 = vrot.slane %v1174, 1
  %v1284 = vsel %vm218, %v1283, %v1282
  %1286 = vmatprep.subr.mxu0 0.0
  %1287 = vmatpush1.msra.mxu0 %v1247
  %1288 = vmatprep.subr.mxu0 0.0
  %1289 = vmatpush1.msra.mxu0 %v1248
  %1290 = vmatprep.subr.mxu0 0.0
  %1291 = vmatpush1.msra.mxu0 %v1249
  %1292 = vmatprep.subr.mxu0 0.0
  %1293 = vmatpush1.msra.mxu0 %v1250
  %1294 = vmatprep.subr.mxu0 0.0
  %1295 = vmatpush1.msra.mxu0 %v1251
  %1296 = vmatprep.subr.mxu0 0.0
  %1297 = vmatpush1.msra.mxu0 %v1252
  %1298 = vmatprep.subr.mxu0 0.0
  %1299 = vmatpush1.msra.mxu0 %v1253
  %1300 = vmatprep.subr.mxu0 0.0
  %1301 = vmatpush1.msra.mxu0 %v1254
  %1302 = vmatprep.subr.mxu0 0.0
  %1303 = vmatpush1.msra.mxu0 %v1255
  %1304 = vmatprep.subr.mxu0 0.0
  %1305 = vmatpush1.msra.mxu0 %v1256
  %1306 = vmatprep.subr.mxu0 0.0
  %1307 = vmatpush1.msra.mxu0 %v1257
  %1308 = vmatprep.subr.mxu0 0.0
  %1309 = vmatpush1.msra.mxu0 %v1258
  %1310 = vmatprep.subr.mxu0 0.0
  %1311 = vmatpush1.msra.mxu0 %v1259
  %1312 = vmatprep.subr.mxu0 0.0
  %1313 = vmatpush1.msra.mxu0 %v1260
  %1314 = vmatprep.subr.mxu0 0.0
  %1315 = vmatpush1.msra.mxu0 %v1261
  %1316 = vmatprep.subr.mxu0 0.0
  %1317 = vmatpush1.msra.mxu0 %v1262
  %1318 = vmatprep.subr.mxu0 0.0
  %1319 = vmatpush1.msra.mxu0 0.0
  %1320 = vmatprep.subr.mxu0 0.0
  %1321 = vmatpush1.msra.mxu0 0.0
  %1322 = vmatprep.subr.mxu0 0.0
  %1323 = vmatpush1.msra.mxu0 0.0
  %1324 = vmatprep.subr.mxu0 0.0
  %1325 = vmatpush1.msra.mxu0 0.0
  %1326 = vmatprep.subr.mxu0 0.0
  %1327 = vmatpush1.msra.mxu0 0.0
  %1328 = vmatprep.subr.mxu0 0.0
  %1329 = vmatpush1.msra.mxu0 0.0
  %1330 = vmatprep.subr.mxu0 0.0
  %1331 = vmatpush1.msra.mxu0 0.0
  %1332 = vmatprep.subr.mxu0 0.0
  %1333 = vmatpush1.msra.mxu0 0.0
  %1334 = vmatprep.subr.mxu0 0.0
  %1335 = vmatpush1.msra.mxu0 0.0
  %1336 = vmatprep.subr.mxu0 0.0
  %1337 = vmatpush1.msra.mxu0 0.0
  %1338 = vmatprep.subr.mxu0 0.0
  %1339 = vmatpush1.msra.mxu0 0.0
  %1340 = vmatprep.subr.mxu0 0.0
  %1341 = vmatpush1.msra.mxu0 0.0
  %1342 = vmatprep.subr.mxu0 0.0
  %1343 = vmatpush1.msra.mxu0 0.0
  %1344 = vmatprep.subr.mxu0 0.0
  %1345 = vmatpush1.msra.mxu0 0.0
  %1346 = vmatprep.subr.mxu0 0.0
  %1347 = vmatpush1.msra.mxu0 0.0
  %1348 = vmatprep.subr.mxu0 0.0
  %1349 = vmatpush1.msra.mxu0 0.0
  %1350 = vmatprep.mubr.f32.mxu0 0.0
  %1351 = vmatmul.mubr.f32.gmra.mrb[0].mxu0 %v1284
  %v1352 = vpop.f32.mrb[0].mxu0
  %v1353 = vadd.f32 0.0, %v1352
  %v1354 = vpop.f32.mrb[0].mxu0
  %1355 = vdwg.mxu0
  %v1357 = vrot.slane %v1353, 1
  %v1358 = vrot.slane %v1353, 2
  %v1359 = vrot.slane %v1353, 3
  %v1360 = vrot.slane %v1353, 4
  %v1361 = vrot.slane %v1353, 5
  %v1362 = vrot.slane %v1353, 6
  %v1363 = vrot.slane %v1353, 7
  %v1372 = vadd.f32 %v1239, %v1353
  %v1373 = vadd.f32 %v1240, %v1357
  %v1374 = vadd.f32 %v1241, %v1358
  %v1375 = vadd.f32 %v1242, %v1359
  %v1376 = vadd.f32 %v1243, %v1360
  %v1377 = vadd.f32 %v1244, %v1361
  %v1378 = vadd.f32 %v1245, %v1362
  %v1379 = vadd.f32 %v1246, %v1363
  %v1380 = vmax.f32 %v1372, 0.0
  %v1381 = vmax.f32 %v1373, 0.0
  %v1382 = vmax.f32 %v1374, 0.0
  %v1383 = vmax.f32 %v1375, 0.0
  %v1384 = vmax.f32 %v1376, 0.0
  %v1385 = vmax.f32 %v1377, 0.0
  %v1386 = vmax.f32 %v1378, 0.0
  %v1387 = vmax.f32 %v1379, 0.0
  %1388 = vst [vmem:[%s4 + $0x6] sm:$0x1] %v1380
  %1389 = vst [vmem:[%s4 + $0x16] sm:$0x1] %v1381
  %1390 = vst [vmem:[%s4 + $0x26] sm:$0x1] %v1382
  %1391 = vst [vmem:[%s4 + $0x36] sm:$0x1] %v1383
  %1392 = vst [vmem:[%s4 + $0x46] sm:$0x1] %v1384
  %1393 = vst [vmem:[%s4 + $0x56] sm:$0x1] %v1385
  %1394 = vst [vmem:[%s4 + $0x66] sm:$0x1] %v1386
  %1395 = vst [vmem:[%s4 + $0x76] sm:$0x1] %v1387
  %v1396 = vld [vmem:[%s0 + $0x7] sm:$0x1]
  %v1397 = vld [vmem:[%s0 + $0x17] sm:$0x1]
  %v1398 = vld [vmem:[%s0 + $0x27] sm:$0x1]
  %v1399 = vld [vmem:[%s0 + $0x37] sm:$0x1]
  %v1400 = vld [vmem:[%s0 + $0x47] sm:$0x1]
  %v1401 = vld [vmem:[%s0 + $0x57] sm:$0x1]
  %v1402 = vld [vmem:[%s0 + $0x67] sm:$0x1]
  %v1403 = vld [vmem:[%s0 + $0x77] sm:$0x1]
  %1405 = vset.pattern.permute.xlu0 0
  %1406 = vperm.xlu0 %1405, %v1396
  %v1407 = vpop.permute.xlu0 %1406
  %1410 = vset.pattern.permute.xlu0 0
  %1411 = vperm.xlu0 %1410, %v1397
  %v1412 = vpop.permute.xlu0 %1411
  %1415 = vset.pattern.permute.xlu0 0
  %1416 = vperm.xlu0 %1415, %v1398
  %v1417 = vpop.permute.xlu0 %1416
  %1420 = vset.pattern.permute.xlu0 0
  %1421 = vperm.xlu0 %1420, %v1399
  %v1422 = vpop.permute.xlu0 %1421
  %1425 = vset.pattern.permute.xlu0 0
  %1426 = vperm.xlu0 %1425, %v1400
  %v1427 = vpop.permute.xlu0 %1426
  %1430 = vset.pattern.permute.xlu0 0
  %1431 = vperm.xlu0 %1430, %v1401
  %v1432 = vpop.permute.xlu0 %1431
  %1435 = vset.pattern.permute.xlu0 0
  %1436 = vperm.xlu0 %1435, %v1402
  %v1437 = vpop.permute.xlu0 %1436
  %1440 = vset.pattern.permute.xlu0 0
  %1441 = vperm.xlu0 %1440, %v1403
  %v1442 = vpop.permute.xlu0 %1441
  %v1444 = vmul.f32 %v1407, %v71
  %v1445 = vmul.f32 %v1412, %v71
  %v1446 = vmul.f32 %v1417, %v71
  %v1447 = vmul.f32 %v1422, %v71
  %v1448 = vmul.f32 %v1427, %v71
  %v1449 = vmul.f32 %v1432, %v71
  %v1450 = vmul.f32 %v1437, %v71
  %v1451 = vmul.f32 %v1442, %v71
  %v1452 = vadd.f32 %v1444, %v85
  %v1453 = vadd.f32 %v1445, %v85
  %v1454 = vadd.f32 %v1446, %v85
  %v1455 = vadd.f32 %v1447, %v85
  %v1456 = vadd.f32 %v1448, %v85
  %v1457 = vadd.f32 %v1449, %v85
  %v1458 = vadd.f32 %v1450, %v85
  %v1459 = vadd.f32 %v1451, %v85
  %v1460 = vld [vmem:[%s3] sm:$0xff]
  %v1461 = vld [vmem:[%s3 + $0x8] sm:$0xff]
  %v1462 = vld [vmem:[%s3 + $0x10] sm:$0xff]
  %v1463 = vld [vmem:[%s3 + $0x18] sm:$0xff]
  %v1464 = vld [vmem:[%s3 + $0x20] sm:$0xff]
  %v1465 = vld [vmem:[%s3 + $0x28] sm:$0xff]
  %v1466 = vld [vmem:[%s3 + $0x30] sm:$0xff]
  %v1467 = vld [vmem:[%s3 + $0x38] sm:$0xff]
  %v1468 = vld [vmem:[%s3 + $0x40] sm:$0xff]
  %v1469 = vld [vmem:[%s3 + $0x48] sm:$0xff]
  %v1470 = vld [vmem:[%s3 + $0x50] sm:$0xff]
  %v1471 = vld [vmem:[%s3 + $0x58] sm:$0xff]
  %v1472 = vld [vmem:[%s3 + $0x60] sm:$0xff]
  %v1473 = vld [vmem:[%s3 + $0x68] sm:$0xff]
  %v1474 = vld [vmem:[%s3 + $0x70] sm:$0xff]
  %v1475 = vld [vmem:[%s3 + $0x78] sm:$0xff]
  %v1484 = vrot.slane %v1381, 7
  %v1485 = vsel %vm200, %v1484, %v1380
  %v1486 = vrot.slane %v1382, 6
  %v1487 = vsel %vm203, %v1486, %v1485
  %v1488 = vrot.slane %v1383, 5
  %v1489 = vsel %vm206, %v1488, %v1487
  %v1490 = vrot.slane %v1384, 4
  %v1491 = vsel %vm209, %v1490, %v1489
  %v1492 = vrot.slane %v1385, 3
  %v1493 = vsel %vm212, %v1492, %v1491
  %v1494 = vrot.slane %v1386, 2
  %v1495 = vsel %vm215, %v1494, %v1493
  %v1496 = vrot.slane %v1387, 1
  %v1497 = vsel %vm218, %v1496, %v1495
  %1499 = vmatprep.subr.mxu0 0.0
  %1500 = vmatpush1.msra.mxu0 %v1460
  %1501 = vmatprep.subr.mxu0 0.0
  %1502 = vmatpush1.msra.mxu0 %v1461
  %1503 = vmatprep.subr.mxu0 0.0
  %1504 = vmatpush1.msra.mxu0 %v1462
  %1505 = vmatprep.subr.mxu0 0.0
  %1506 = vmatpush1.msra.mxu0 %v1463
  %1507 = vmatprep.subr.mxu0 0.0
  %1508 = vmatpush1.msra.mxu0 %v1464
  %1509 = vmatprep.subr.mxu0 0.0
  %1510 = vmatpush1.msra.mxu0 %v1465
  %1511 = vmatprep.subr.mxu0 0.0
  %1512 = vmatpush1.msra.mxu0 %v1466
  %1513 = vmatprep.subr.mxu0 0.0
  %1514 = vmatpush1.msra.mxu0 %v1467
  %1515 = vmatprep.subr.mxu0 0.0
  %1516 = vmatpush1.msra.mxu0 %v1468
  %1517 = vmatprep.subr.mxu0 0.0
  %1518 = vmatpush1.msra.mxu0 %v1469
  %1519 = vmatprep.subr.mxu0 0.0
  %1520 = vmatpush1.msra.mxu0 %v1470
  %1521 = vmatprep.subr.mxu0 0.0
  %1522 = vmatpush1.msra.mxu0 %v1471
  %1523 = vmatprep.subr.mxu0 0.0
  %1524 = vmatpush1.msra.mxu0 %v1472
  %1525 = vmatprep.subr.mxu0 0.0
  %1526 = vmatpush1.msra.mxu0 %v1473
  %1527 = vmatprep.subr.mxu0 0.0
  %1528 = vmatpush1.msra.mxu0 %v1474
  %1529 = vmatprep.subr.mxu0 0.0
  %1530 = vmatpush1.msra.mxu0 %v1475
  %1531 = vmatprep.subr.mxu0 0.0
  %1532 = vmatpush1.msra.mxu0 0.0
  %1533 = vmatprep.subr.mxu0 0.0
  %1534 = vmatpush1.msra.mxu0 0.0
  %1535 = vmatprep.subr.mxu0 0.0
  %1536 = vmatpush1.msra.mxu0 0.0
  %1537 = vmatprep.subr.mxu0 0.0
  %1538 = vmatpush1.msra.mxu0 0.0
  %1539 = vmatprep.subr.mxu0 0.0
  %1540 = vmatpush1.msra.mxu0 0.0
  %1541 = vmatprep.subr.mxu0 0.0
  %1542 = vmatpush1.msra.mxu0 0.0
  %1543 = vmatprep.subr.mxu0 0.0
  %1544 = vmatpush1.msra.mxu0 0.0
  %1545 = vmatprep.subr.mxu0 0.0
  %1546 = vmatpush1.msra.mxu0 0.0
  %1547 = vmatprep.subr.mxu0 0.0
  %1548 = vmatpush1.msra.mxu0 0.0
  %1549 = vmatprep.subr.mxu0 0.0
  %1550 = vmatpush1.msra.mxu0 0.0
  %1551 = vmatprep.subr.mxu0 0.0
  %1552 = vmatpush1.msra.mxu0 0.0
  %1553 = vmatprep.subr.mxu0 0.0
  %1554 = vmatpush1.msra.mxu0 0.0
  %1555 = vmatprep.subr.mxu0 0.0
  %1556 = vmatpush1.msra.mxu0 0.0
  %1557 = vmatprep.subr.mxu0 0.0
  %1558 = vmatpush1.msra.mxu0 0.0
  %1559 = vmatprep.subr.mxu0 0.0
  %1560 = vmatpush1.msra.mxu0 0.0
  %1561 = vmatprep.subr.mxu0 0.0
  %1562 = vmatpush1.msra.mxu0 0.0
  %1563 = vmatprep.mubr.f32.mxu0 0.0
  %1564 = vmatmul.mubr.f32.gmra.mrb[0].mxu0 %v1497
  %v1565 = vpop.f32.mrb[0].mxu0
  %v1566 = vadd.f32 0.0, %v1565
  %v1567 = vpop.f32.mrb[0].mxu0
  %1568 = vdwg.mxu0
  %v1570 = vrot.slane %v1566, 1
  %v1571 = vrot.slane %v1566, 2
  %v1572 = vrot.slane %v1566, 3
  %v1573 = vrot.slane %v1566, 4
  %v1574 = vrot.slane %v1566, 5
  %v1575 = vrot.slane %v1566, 6
  %v1576 = vrot.slane %v1566, 7
  %v1585 = vadd.f32 %v1452, %v1566
  %v1586 = vadd.f32 %v1453, %v1570
  %v1587 = vadd.f32 %v1454, %v1571
  %v1588 = vadd.f32 %v1455, %v1572
  %v1589 = vadd.f32 %v1456, %v1573
  %v1590 = vadd.f32 %v1457, %v1574
  %v1591 = vadd.f32 %v1458, %v1575
  %v1592 = vadd.f32 %v1459, %v1576
  %v1593 = vmax.f32 %v1585, 0.0
  %v1594 = vmax.f32 %v1586, 0.0
  %v1595 = vmax.f32 %v1587, 0.0
  %v1596 = vmax.f32 %v1588, 0.0
  %v1597 = vmax.f32 %v1589, 0.0
  %v1598 = vmax.f32 %v1590, 0.0
  %v1599 = vmax.f32 %v1591, 0.0
  %v1600 = vmax.f32 %v1592, 0.0
  %1601 = vst [vmem:[%s4 + $0x7] sm:$0x1] %v1593
  %1602 = vst [vmem:[%s4 + $0x17] sm:$0x1] %v1594
  %1603 = vst [vmem:[%s4 + $0x27] sm:$0x1] %v1595
  %1604 = vst [vmem:[%s4 + $0x37] sm:$0x1] %v1596
  %1605 = vst [vmem:[%s4 + $0x47] sm:$0x1] %v1597
  %1606 = vst [vmem:[%s4 + $0x57] sm:$0x1] %v1598
  %1607 = vst [vmem:[%s4 + $0x67] sm:$0x1] %v1599
  %1608 = vst [vmem:[%s4 + $0x77] sm:$0x1] %v1600
  %v1609 = vld [vmem:[%s0 + $0x8] sm:$0x1]
  %v1610 = vld [vmem:[%s0 + $0x18] sm:$0x1]
  %v1611 = vld [vmem:[%s0 + $0x28] sm:$0x1]
  %v1612 = vld [vmem:[%s0 + $0x38] sm:$0x1]
  %v1613 = vld [vmem:[%s0 + $0x48] sm:$0x1]
  %v1614 = vld [vmem:[%s0 + $0x58] sm:$0x1]
  %v1615 = vld [vmem:[%s0 + $0x68] sm:$0x1]
  %v1616 = vld [vmem:[%s0 + $0x78] sm:$0x1]
  %1618 = vset.pattern.permute.xlu0 0
  %1619 = vperm.xlu0 %1618, %v1609
  %v1620 = vpop.permute.xlu0 %1619
  %1623 = vset.pattern.permute.xlu0 0
  %1624 = vperm.xlu0 %1623, %v1610
  %v1625 = vpop.permute.xlu0 %1624
  %1628 = vset.pattern.permute.xlu0 0
  %1629 = vperm.xlu0 %1628, %v1611
  %v1630 = vpop.permute.xlu0 %1629
  %1633 = vset.pattern.permute.xlu0 0
  %1634 = vperm.xlu0 %1633, %v1612
  %v1635 = vpop.permute.xlu0 %1634
  %1638 = vset.pattern.permute.xlu0 0
  %1639 = vperm.xlu0 %1638, %v1613
  %v1640 = vpop.permute.xlu0 %1639
  %1643 = vset.pattern.permute.xlu0 0
  %1644 = vperm.xlu0 %1643, %v1614
  %v1645 = vpop.permute.xlu0 %1644
  %1648 = vset.pattern.permute.xlu0 0
  %1649 = vperm.xlu0 %1648, %v1615
  %v1650 = vpop.permute.xlu0 %1649
  %1653 = vset.pattern.permute.xlu0 0
  %1654 = vperm.xlu0 %1653, %v1616
  %v1655 = vpop.permute.xlu0 %1654
  %v1657 = vmul.f32 %v1620, %v71
  %v1658 = vmul.f32 %v1625, %v71
  %v1659 = vmul.f32 %v1630, %v71
  %v1660 = vmul.f32 %v1635, %v71
  %v1661 = vmul.f32 %v1640, %v71
  %v1662 = vmul.f32 %v1645, %v71
  %v1663 = vmul.f32 %v1650, %v71
  %v1664 = vmul.f32 %v1655, %v71
  %v1665 = vadd.f32 %v1657, %v85
  %v1666 = vadd.f32 %v1658, %v85
  %v1667 = vadd.f32 %v1659, %v85
  %v1668 = vadd.f32 %v1660, %v85
  %v1669 = vadd.f32 %v1661, %v85
  %v1670 = vadd.f32 %v1662, %v85
  %v1671 = vadd.f32 %v1663, %v85
  %v1672 = vadd.f32 %v1664, %v85
  %v1673 = vld [vmem:[%s3] sm:$0xff]
  %v1674 = vld [vmem:[%s3 + $0x8] sm:$0xff]
  %v1675 = vld [vmem:[%s3 + $0x10] sm:$0xff]
  %v1676 = vld [vmem:[%s3 + $0x18] sm:$0xff]
  %v1677 = vld [vmem:[%s3 + $0x20] sm:$0xff]
  %v1678 = vld [vmem:[%s3 + $0x28] sm:$0xff]
  %v1679 = vld [vmem:[%s3 + $0x30] sm:$0xff]
  %v1680 = vld [vmem:[%s3 + $0x38] sm:$0xff]
  %v1681 = vld [vmem:[%s3 + $0x40] sm:$0xff]
  %v1682 = vld [vmem:[%s3 + $0x48] sm:$0xff]
  %v1683 = vld [vmem:[%s3 + $0x50] sm:$0xff]
  %v1684 = vld [vmem:[%s3 + $0x58] sm:$0xff]
  %v1685 = vld [vmem:[%s3 + $0x60] sm:$0xff]
  %v1686 = vld [vmem:[%s3 + $0x68] sm:$0xff]
  %v1687 = vld [vmem:[%s3 + $0x70] sm:$0xff]
  %v1688 = vld [vmem:[%s3 + $0x78] sm:$0xff]
  %v1697 = vrot.slane %v1594, 7
  %v1698 = vsel %vm200, %v1697, %v1593
  %v1699 = vrot.slane %v1595, 6
  %v1700 = vsel %vm203, %v1699, %v1698
  %v1701 = vrot.slane %v1596, 5
  %v1702 = vsel %vm206, %v1701, %v1700
  %v1703 = vrot.slane %v1597, 4
  %v1704 = vsel %vm209, %v1703, %v1702
  %v1705 = vrot.slane %v1598, 3
  %v1706 = vsel %vm212, %v1705, %v1704
  %v1707 = vrot.slane %v1599, 2
  %v1708 = vsel %vm215, %v1707, %v1706
  %v1709 = vrot.slane %v1600, 1
  %v1710 = vsel %vm218, %v1709, %v1708
  %1712 = vmatprep.subr.mxu0 0.0
  %1713 = vmatpush1.msra.mxu0 %v1673
  %1714 = vmatprep.subr.mxu0 0.0
  %1715 = vmatpush1.msra.mxu0 %v1674
  %1716 = vmatprep.subr.mxu0 0.0
  %1717 = vmatpush1.msra.mxu0 %v1675
  %1718 = vmatprep.subr.mxu0 0.0
  %1719 = vmatpush1.msra.mxu0 %v1676
  %1720 = vmatprep.subr.mxu0 0.0
  %1721 = vmatpush1.msra.mxu0 %v1677
  %1722 = vmatprep.subr.mxu0 0.0
  %1723 = vmatpush1.msra.mxu0 %v1678
  %1724 = vmatprep.subr.mxu0 0.0
  %1725 = vmatpush1.msra.mxu0 %v1679
  %1726 = vmatprep.subr.mxu0 0.0
  %1727 = vmatpush1.msra.mxu0 %v1680
  %1728 = vmatprep.subr.mxu0 0.0
  %1729 = vmatpush1.msra.mxu0 %v1681
  %1730 = vmatprep.subr.mxu0 0.0
  %1731 = vmatpush1.msra.mxu0 %v1682
  %1732 = vmatprep.subr.mxu0 0.0
  %1733 = vmatpush1.msra.mxu0 %v1683
  %1734 = vmatprep.subr.mxu0 0.0
  %1735 = vmatpush1.msra.mxu0 %v1684
  %1736 = vmatprep.subr.mxu0 0.0
  %1737 = vmatpush1.msra.mxu0 %v1685
  %1738 = vmatprep.subr.mxu0 0.0
  %1739 = vmatpush1.msra.mxu0 %v1686
  %1740 = vmatprep.subr.mxu0 0.0
  %1741 = vmatpush1.msra.mxu0 %v1687
  %1742 = vmatprep.subr.mxu0 0.0
  %1743 = vmatpush1.msra.mxu0 %v1688
  %1744 = vmatprep.subr.mxu0 0.0
  %1745 = vmatpush1.msra.mxu0 0.0
  %1746 = vmatprep.subr.mxu0 0.0
  %1747 = vmatpush1.msra.mxu0 0.0
  %1748 = vmatprep.subr.mxu0 0.0
  %1749 = vmatpush1.msra.mxu0 0.0
  %1750 = vmatprep.subr.mxu0 0.0
  %1751 = vmatpush1.msra.mxu0 0.0
  %1752 = vmatprep.subr.mxu0 0.0
  %1753 = vmatpush1.msra.mxu0 0.0
  %1754 = vmatprep.subr.mxu0 0.0
  %1755 = vmatpush1.msra.mxu0 0.0
  %1756 = vmatprep.subr.mxu0 0.0
  %1757 = vmatpush1.msra.mxu0 0.0
  %1758 = vmatprep.subr.mxu0 0.0
  %1759 = vmatpush1.msra.mxu0 0.0
  %1760 = vmatprep.subr.mxu0 0.0
  %1761 = vmatpush1.msra.mxu0 0.0
  %1762 = vmatprep.subr.mxu0 0.0
  %1763 = vmatpush1.msra.mxu0 0.0
  %1764 = vmatprep.subr.mxu0 0.0
  %1765 = vmatpush1.msra.mxu0 0.0
  %1766 = vmatprep.subr.mxu0 0.0
  %1767 = vmatpush1.msra.mxu0 0.0
  %1768 = vmatprep.subr.mxu0 0.0
  %1769 = vmatpush1.msra.mxu0 0.0
  %1770 = vmatprep.subr.mxu0 0.0
  %1771 = vmatpush1.msra.mxu0 0.0
  %1772 = vmatprep.subr.mxu0 0.0
  %1773 = vmatpush1.msra.mxu0 0.0
  %1774 = vmatprep.subr.mxu0 0.0
  %1775 = vmatpush1.msra.mxu0 0.0
  %1776 = vmatprep.mubr.f32.mxu0 0.0
  %1777 = vmatmul.mubr.f32.gmra.mrb[0].mxu0 %v1710
  %v1778 = vpop.f32.mrb[0].mxu0
  %v1779 = vadd.f32 0.0, %v1778
  %v1780 = vpop.f32.mrb[0].mxu0
  %1781 = vdwg.mxu0
  %v1783 = vrot.slane %v1779, 1
  %v1784 = vrot.slane %v1779, 2
  %v1785 = vrot.slane %v1779, 3
  %v1786 = vrot.slane %v1779, 4
  %v1787 = vrot.slane %v1779, 5
  %v1788 = vrot.slane %v1779, 6
  %v1789 = vrot.slane %v1779, 7
  %v1798 = vadd.f32 %v1665, %v1779
  %v1799 = vadd.f32 %v1666, %v1783
  %v1800 = vadd.f32 %v1667, %v1784
  %v1801 = vadd.f32 %v1668, %v1785
  %v1802 = vadd.f32 %v1669, %v1786
  %v1803 = vadd.f32 %v1670, %v1787
  %v1804 = vadd.f32 %v1671, %v1788
  %v1805 = vadd.f32 %v1672, %v1789
  %v1806 = vmax.f32 %v1798, 0.0
  %v1807 = vmax.f32 %v1799, 0.0
  %v1808 = vmax.f32 %v1800, 0.0
  %v1809 = vmax.f32 %v1801, 0.0
  %v1810 = vmax.f32 %v1802, 0.0
  %v1811 = vmax.f32 %v1803, 0.0
  %v1812 = vmax.f32 %v1804, 0.0
  %v1813 = vmax.f32 %v1805, 0.0
  %1814 = vst [vmem:[%s4 + $0x8] sm:$0x1] %v1806
  %1815 = vst [vmem:[%s4 + $0x18] sm:$0x1] %v1807
  %1816 = vst [vmem:[%s4 + $0x28] sm:$0x1] %v1808
  %1817 = vst [vmem:[%s4 + $0x38] sm:$0x1] %v1809
  %1818 = vst [vmem:[%s4 + $0x48] sm:$0x1] %v1810
  %1819 = vst [vmem:[%s4 + $0x58] sm:$0x1] %v1811
  %1820 = vst [vmem:[%s4 + $0x68] sm:$0x1] %v1812
  %1821 = vst [vmem:[%s4 + $0x78] sm:$0x1] %v1813
  %v1822 = vld [vmem:[%s0 + $0x9] sm:$0x1]
  %v1823 = vld [vmem:[%s0 + $0x19] sm:$0x1]
  %v1824 = vld [vmem:[%s0 + $0x29] sm:$0x1]
  %v1825 = vld [vmem:[%s0 + $0x39] sm:$0x1]
  %v1826 = vld [vmem:[%s0 + $0x49] sm:$0x1]
  %v1827 = vld [vmem:[%s0 + $0x59] sm:$0x1]
  %v1828 = vld [vmem:[%s0 + $0x69] sm:$0x1]
  %v1829 = vld [vmem:[%s0 + $0x79] sm:$0x1]
  %1831 = vset.pattern.permute.xlu0 0
  %1832 = vperm.xlu0 %1831, %v1822
  %v1833 = vpop.permute.xlu0 %1832
  %1836 = vset.pattern.permute.xlu0 0
  %1837 = vperm.xlu0 %1836, %v1823
  %v1838 = vpop.permute.xlu0 %1837
  %1841 = vset.pattern.permute.xlu0 0
  %1842 = vperm.xlu0 %1841, %v1824
  %v1843 = vpop.permute.xlu0 %1842
  %1846 = vset.pattern.permute.xlu0 0
  %1847 = vperm.xlu0 %1846, %v1825
  %v1848 = vpop.permute.xlu0 %1847
  %1851 = vset.pattern.permute.xlu0 0
  %1852 = vperm.xlu0 %1851, %v1826
  %v1853 = vpop.permute.xlu0 %1852
  %1856 = vset.pattern.permute.xlu0 0
  %1857 = vperm.xlu0 %1856, %v1827
  %v1858 = vpop.permute.xlu0 %1857
  %1861 = vset.pattern.permute.xlu0 0
  %1862 = vperm.xlu0 %1861, %v1828
  %v1863 = vpop.permute.xlu0 %1862
  %1866 = vset.pattern.permute.xlu0 0
  %1867 = vperm.xlu0 %1866, %v1829
  %v1868 = vpop.permute.xlu0 %1867
  %v1870 = vmul.f32 %v1833, %v71
  %v1871 = vmul.f32 %v1838, %v71
  %v1872 = vmul.f32 %v1843, %v71
  %v1873 = vmul.f32 %v1848, %v71
  %v1874 = vmul.f32 %v1853, %v71
  %v1875 = vmul.f32 %v1858, %v71
  %v1876 = vmul.f32 %v1863, %v71
  %v1877 = vmul.f32 %v1868, %v71
  %v1878 = vadd.f32 %v1870, %v85
  %v1879 = vadd.f32 %v1871, %v85
  %v1880 = vadd.f32 %v1872, %v85
  %v1881 = vadd.f32 %v1873, %v85
  %v1882 = vadd.f32 %v1874, %v85
  %v1883 = vadd.f32 %v1875, %v85
  %v1884 = vadd.f32 %v1876, %v85
  %v1885 = vadd.f32 %v1877, %v85
  %v1886 = vld [vmem:[%s3] sm:$0xff]
  %v1887 = vld [vmem:[%s3 + $0x8] sm:$0xff]
  %v1888 = vld [vmem:[%s3 + $0x10] sm:$0xff]
  %v1889 = vld [vmem:[%s3 + $0x18] sm:$0xff]
  %v1890 = vld [vmem:[%s3 + $0x20] sm:$0xff]
  %v1891 = vld [vmem:[%s3 + $0x28] sm:$0xff]
  %v1892 = vld [vmem:[%s3 + $0x30] sm:$0xff]
  %v1893 = vld [vmem:[%s3 + $0x38] sm:$0xff]
  %v1894 = vld [vmem:[%s3 + $0x40] sm:$0xff]
  %v1895 = vld [vmem:[%s3 + $0x48] sm:$0xff]
  %v1896 = vld [vmem:[%s3 + $0x50] sm:$0xff]
  %v1897 = vld [vmem:[%s3 + $0x58] sm:$0xff]
  %v1898 = vld [vmem:[%s3 + $0x60] sm:$0xff]
  %v1899 = vld [vmem:[%s3 + $0x68] sm:$0xff]
  %v1900 = vld [vmem:[%s3 + $0x70] sm:$0xff]
  %v1901 = vld [vmem:[%s3 + $0x78] sm:$0xff]
  %v1910 = vrot.slane %v1807, 7
  %v1911 = vsel %vm200, %v1910, %v1806
  %v1912 = vrot.slane %v1808, 6
  %v1913 = vsel %vm203, %v1912, %v1911
  %v1914 = vrot.slane %v1809, 5
  %v1915 = vsel %vm206, %v1914, %v1913
  %v1916 = vrot.slane %v1810, 4
  %v1917 = vsel %vm209, %v1916, %v1915
  %v1918 = vrot.slane %v1811, 3
  %v1919 = vsel %vm212, %v1918, %v1917
  %v1920 = vrot.slane %v1812, 2
  %v1921 = vsel %vm215, %v1920, %v1919
  %v1922 = vrot.slane %v1813, 1
  %v1923 = vsel %vm218, %v1922, %v1921
  %1925 = vmatprep.subr.mxu0 0.0
  %1926 = vmatpush1.msra.mxu0 %v1886
  %1927 = vmatprep.subr.mxu0 0.0
  %1928 = vmatpush1.msra.mxu0 %v1887
  %1929 = vmatprep.subr.mxu0 0.0
  %1930 = vmatpush1.msra.mxu0 %v1888
  %1931 = vmatprep.subr.mxu0 0.0
  %1932 = vmatpush1.msra.mxu0 %v1889
  %1933 = vmatprep.subr.mxu0 0.0
  %1934 = vmatpush1.msra.mxu0 %v1890
  %1935 = vmatprep.subr.mxu0 0.0
  %1936 = vmatpush1.msra.mxu0 %v1891
  %1937 = vmatprep.subr.mxu0 0.0
  %1938 = vmatpush1.msra.mxu0 %v1892
  %1939 = vmatprep.subr.mxu0 0.0
  %1940 = vmatpush1.msra.mxu0 %v1893
  %1941 = vmatprep.subr.mxu0 0.0
  %1942 = vmatpush1.msra.mxu0 %v1894
  %1943 = vmatprep.subr.mxu0 0.0
  %1944 = vmatpush1.msra.mxu0 %v1895
  %1945 = vmatprep.subr.mxu0 0.0
  %1946 = vmatpush1.msra.mxu0 %v1896
  %1947 = vmatprep.subr.mxu0 0.0
  %1948 = vmatpush1.msra.mxu0 %v1897
  %1949 = vmatprep.subr.mxu0 0.0
  %1950 = vmatpush1.msra.mxu0 %v1898
  %1951 = vmatprep.subr.mxu0 0.0
  %1952 = vmatpush1.msra.mxu0 %v1899
  %1953 = vmatprep.subr.mxu0 0.0
  %1954 = vmatpush1.msra.mxu0 %v1900
  %1955 = vmatprep.subr.mxu0 0.0
  %1956 = vmatpush1.msra.mxu0 %v1901
  %1957 = vmatprep.subr.mxu0 0.0
  %1958 = vmatpush1.msra.mxu0 0.0
  %1959 = vmatprep.subr.mxu0 0.0
  %1960 = vmatpush1.msra.mxu0 0.0
  %1961 = vmatprep.subr.mxu0 0.0
  %1962 = vmatpush1.msra.mxu0 0.0
  %1963 = vmatprep.subr.mxu0 0.0
  %1964 = vmatpush1.msra.mxu0 0.0
  %1965 = vmatprep.subr.mxu0 0.0
  %1966 = vmatpush1.msra.mxu0 0.0
  %1967 = vmatprep.subr.mxu0 0.0
  %1968 = vmatpush1.msra.mxu0 0.0
  %1969 = vmatprep.subr.mxu0 0.0
  %1970 = vmatpush1.msra.mxu0 0.0
  %1971 = vmatprep.subr.mxu0 0.0
  %1972 = vmatpush1.msra.mxu0 0.0
  %1973 = vmatprep.subr.mxu0 0.0
  %1974 = vmatpush1.msra.mxu0 0.0
  %1975 = vmatprep.subr.mxu0 0.0
  %1976 = vmatpush1.msra.mxu0 0.0
  %1977 = vmatprep.subr.mxu0 0.0
  %1978 = vmatpush1.msra.mxu0 0.0
  %1979 = vmatprep.subr.mxu0 0.0
  %1980 = vmatpush1.msra.mxu0 0.0
  %1981 = vmatprep.subr.mxu0 0.0
  %1982 = vmatpush1.msra.mxu0 0.0
  %1983 = vmatprep.subr.mxu0 0.0
  %1984 = vmatpush1.msra.mxu0 0.0
  %1985 = vmatprep.subr.mxu0 0.0
  %1986 = vmatpush1.msra.mxu0 0.0
  %1987 = vmatprep.subr.mxu0 0.0
  %1988 = vmatpush1.msra.mxu0 0.0
  %1989 = vmatprep.mubr.f32.mxu0 0.0
  %1990 = vmatmul.mubr.f32.gmra.mrb[0].mxu0 %v1923
  %v1991 = vpop.f32.mrb[0].mxu0
  %v1992 = vadd.f32 0.0, %v1991
  %v1993 = vpop.f32.mrb[0].mxu0
  %1994 = vdwg.mxu0
  %v1996 = vrot.slane %v1992, 1
  %v1997 = vrot.slane %v1992, 2
  %v1998 = vrot.slane %v1992, 3
  %v1999 = vrot.slane %v1992, 4
  %v2000 = vrot.slane %v1992, 5
  %v2001 = vrot.slane %v1992, 6
  %v2002 = vrot.slane %v1992, 7
  %v2011 = vadd.f32 %v1878, %v1992
  %v2012 = vadd.f32 %v1879, %v1996
  %v2013 = vadd.f32 %v1880, %v1997
  %v2014 = vadd.f32 %v1881, %v1998
  %v2015 = vadd.f32 %v1882, %v1999
  %v2016 = vadd.f32 %v1883, %v2000
  %v2017 = vadd.f32 %v1884, %v2001
  %v2018 = vadd.f32 %v1885, %v2002
  %v2019 = vmax.f32 %v2011, 0.0
  %v2020 = vmax.f32 %v2012, 0.0
  %v2021 = vmax.f32 %v2013, 0.0
  %v2022 = vmax.f32 %v2014, 0.0
  %v2023 = vmax.f32 %v2015, 0.0
  %v2024 = vmax.f32 %v2016, 0.0
  %v2025 = vmax.f32 %v2017, 0.0
  %v2026 = vmax.f32 %v2018, 0.0
  %2027 = vst [vmem:[%s4 + $0x9] sm:$0x1] %v2019
  %2028 = vst [vmem:[%s4 + $0x19] sm:$0x1] %v2020
  %2029 = vst [vmem:[%s4 + $0x29] sm:$0x1] %v2021
  %2030 = vst [vmem:[%s4 + $0x39] sm:$0x1] %v2022
  %2031 = vst [vmem:[%s4 + $0x49] sm:$0x1] %v2023
  %2032 = vst [vmem:[%s4 + $0x59] sm:$0x1] %v2024
  %2033 = vst [vmem:[%s4 + $0x69] sm:$0x1] %v2025
  %2034 = vst [vmem:[%s4 + $0x79] sm:$0x1] %v2026
  // Predicated region
  $region18: #{vanilla_rnn_forward.1} parent=0 // pred_check
    _
  $region19: #{vanilla_rnn_forward.1} parent=0 // pred_check_branch
    %2036 = sbr.rel (0) target = $region21
  $region20: #{vanilla_rnn_forward.1} parent=0 // pred_region
    _
  $region21: #{vanilla_rnn_forward.1} parent=0 // pred_fallthru
    _
  // Predicated region
  $region22: #{vanilla_rnn_forward.1} parent=0 // pred_check
    _
  $region23: #{vanilla_rnn_forward.1} parent=0 // pred_check_branch
    %2038 = sbr.rel (0) target = $region25
  $region24: #{vanilla_rnn_forward.1} parent=0 // pred_region
    _
  $region25: #{vanilla_rnn_forward.1} parent=0 // pred_fallthru
    _

</llo_original>
